<compile_context>
chip_gen: v7x
topology: tpu7x:2x2x1
jax: 0.10.0
libtpu: 0.0.40
codegen_flags: <defaults>
</compile_context>

<pallas_src>
import functools

import numpy as np
import jax
import jax.numpy as jnp
from jax import lax
from jax.experimental import pallas as pl
from jax.experimental.pallas import tpu as pltpu

NEG_SLOPE = 0.01     # nn.LeakyReLU default negative_slope
BN_EPS = 1e-5        # nn.BatchNorm2d default eps
PAD_LANES = 128      # lane zero-pad for tap shifts; requires (k-1)*wu + (k-1) <= 128


def _vmem_spec():
    # whole array resident in VMEM (total working set here is ~2-3 MiB)
    return pl.BlockSpec(memory_space=pltpu.MemorySpace.VMEM)


# ------------------------------ fused kernel ---------------------------------
def decoder_kernel(x_ref, ut_ref, f_ref, gamma_ref, beta_ref,
                   w1_ref, b1_ref, w2_ref, b2_ref, o_ref, *, n, wu, k):
    # x_ref:      (N*Cin, H*W)     input slab, rows ordered (image, channel)
    # ut_ref:     (H*W, Hu*Wu)     bilinear-2x Kronecker upsample constant
    # f_ref:      (N*Cin, N*Cin)   channel-fold matrix F[r,r'] = (r%Cin == r'%Cin)
    # gamma/beta: (N*Cin, 1)       BN affine params, pre-tiled over images
    # w*_ref:     (N*Co, K*K*N*Ci) tap-stacked, per-image block-diagonal weights
    # b*_ref:     (N*Co, 1)
    # o_ref:      (N*Cout, Hu*Wu)  lane-dense output slab
    huwu = ut_ref.shape[1]

    # ---- bilinear 2x upsample: ONE 256-deep-contraction MXU matmul ----------
    y = jnp.dot(x_ref[...], ut_ref[...], preferred_element_type=jnp.float32)

    # ---- BatchNorm2d (training mode, biased batch variance), single pass ----
    # Fold channel sums across images on the MXU, then var = E[y^2] - mean^2.
    t1 = jnp.dot(f_ref[...], y, preferred_element_type=jnp.float32)
    t2 = jnp.dot(f_ref[...], y * y, preferred_element_type=jnp.float32)
    inv_cnt = 1.0 / (n * huwu)
    mean = jnp.sum(t1, axis=1, keepdims=True) * inv_cnt        # (N*Cin, 1)
    var = jnp.sum(t2, axis=1, keepdims=True) * inv_cnt - mean * mean
    scale = gamma_ref[...] * lax.rsqrt(var + BN_EPS)
    shift = beta_ref[...] - mean * scale
    y = y * scale + shift

    # ---- ConvTranspose2d (== VALID conv) + LeakyReLU: one matmul each -------
    def conv_lrelu(act, w_ref, b_ref):
        rows = act.shape[0]
        a_pad = jnp.concatenate(
            [act, jnp.zeros((rows, PAD_LANES), jnp.float32)], axis=1)
        # tap-shifted copies stacked on the contraction axis (sublanes)
        rhs = jnp.concatenate(
            [a_pad[:, dh * wu + dw:dh * wu + dw + huwu]
             for dh in range(k) for dw in range(k)], axis=0)   # (K*K*rows, Hu*Wu)
        z = jnp.dot(w_ref[...], rhs, preferred_element_type=jnp.float32)
        z = z + b_ref[...]
        return jnp.maximum(z, NEG_SLOPE * z)                   # LeakyReLU

    h1 = conv_lrelu(y, w1_ref, b1_ref)                         # (N*Cout, Hu*Wu)
    o_ref[...] = conv_lrelu(h1, w2_ref, b2_ref)                # (N*Cout, Hu*Wu)


# ---------------------- host-side helpers (trace-time) -----------------------
def _upsample_matrix_np(n_in):
    """(2*n_in, n_in) bilinear 2x upsampling matrix, PyTorch align_corners=False."""
    n_out = 2 * n_in
    src = (np.arange(n_out, dtype=np.float64) + 0.5) / 2.0 - 0.5
    src = np.maximum(src, 0.0)                        # PyTorch clamps negatives
    i0 = np.floor(src).astype(np.int64)
    i1 = np.minimum(i0 + 1, n_in - 1)
    lam = src - i0
    u = np.zeros((n_out, n_in), np.float64)
    u[np.arange(n_out), i0] += 1.0 - lam
    u[np.arange(n_out), i1] += lam
    return u


@functools.partial(jax.jit, static_argnums=7)
def decoder_forward(x, gamma, beta, w1_t, b1, w2_t, b2, ksize):
    n, cin, h, w = x.shape
    cout = w1_t.shape[1]       # ConvTranspose2d weight: (c_in, c_out, kh, kw)
    k = ksize
    pad = k // 2 + 1
    assert k - 1 - pad == 0, "only ksize with pad == ksize-1 (e.g. ksize=3) supported"
    hu, wu = 2 * h, 2 * w
    hw, huwu = h * w, hu * wu
    assert (k - 1) * wu + (k - 1) <= PAD_LANES

    # bilinear 2x upsample constant: built with numpy at trace time -> literal
    u_h = _upsample_matrix_np(h)                      # (hu, h)
    u_w = _upsample_matrix_np(w)                      # (wu, w)
    ut = jnp.asarray(np.kron(u_h.T, u_w.T), jnp.float32)        # (hw, huwu)

    # channel-fold matrix for cross-image BN statistics
    r = np.arange(n * cin)
    fmat = jnp.asarray((r[:, None] % cin == r[None, :] % cin), jnp.float32)

    # ConvTranspose2d -> equivalent VALID-conv weights, tap-stacked on the
    # contraction axis and block-diagonal over images (one matmul per conv).
    def block_lhs(w_t):
        w_eq = jnp.flip(w_t, axis=(2, 3)).transpose(1, 0, 2, 3)   # (co, ci, k, k)
        co, ci = w_eq.shape[0], w_eq.shape[1]
        w_taps = w_eq.transpose(2, 3, 0, 1).reshape(k * k, co, ci)
        blk = jnp.einsum('toc,nm->notmc', w_taps, jnp.eye(n, dtype=w_t.dtype))
        return blk.reshape(n * co, k * k * n * ci)

    w1_all = block_lhs(w1_t)                          # (n*cout, k*k*n*cin)
    w2_all = block_lhs(w2_t)                          # (n*cout, k*k*n*cout)
    b1_all = jnp.tile(b1, (n,)).reshape(n * cout, 1)
    b2_all = jnp.tile(b2, (n,)).reshape(n * cout, 1)
    gamma_b = jnp.tile(gamma, (n,)).reshape(n * cin, 1)
    beta_b = jnp.tile(beta, (n,)).reshape(n * cin, 1)

    x_slab = x.reshape(n * cin, hw)                   # free reshape, lane-dense

    kern = functools.partial(decoder_kernel, n=n, wu=wu, k=k)
    slab = pl.pallas_call(
        kern,
        out_shape=jax.ShapeDtypeStruct((n * cout, huwu), jnp.float32),
        in_specs=[_vmem_spec()] * 9,
        out_specs=_vmem_spec(),
    )(x_slab, ut, fmat, gamma_b, beta_b, w1_all, b1_all, w2_all, b2_all)

    # free reshape + one slice: keep the valid region of both VALID convs
    ho, wo = hu - 2 * (k - 1), wu - 2 * (k - 1)
    return slab.reshape(n, cout, hu, wu)[:, :, :ho, :wo]


# ---------------- pure-JAX reference (for verification) ----------------------
def _reference_upsample2x(x):
    n, c, h, w = x.shape

    def src_idx(n_in):
        s = (jnp.arange(2 * n_in, dtype=jnp.float32) + 0.5) / 2.0 - 0.5
        s = jnp.maximum(s, 0.0)
        i0 = jnp.floor(s).astype(jnp.int32)
        i1 = jnp.minimum(i0 + 1, n_in - 1)
        lam = s - i0.astype(jnp.float32)
        return i0, i1, lam

    r0, r1, rl = src_idx(h)
    c0, c1, cl = src_idx(w)
    xr = (x[:, :, r0, :] * (1.0 - rl)[None, None, :, None]
          + x[:, :, r1, :] * rl[None, None, :, None])
    return (xr[:, :, :, c0] * (1.0 - cl)[None, None, None, :]
            + xr[:, :, :, c1] * cl[None, None, None, :])


def reference(x, gamma, beta, w1_t, b1, w2_t, b2, ksize):
    pad = ksize // 2 + 1
    y = _reference_upsample2x(x)
    mean = y.mean(axis=(0, 2, 3), keepdims=True)
    var = ((y - mean) ** 2).mean(axis=(0, 2, 3), keepdims=True)
    y = ((y - mean) * lax.rsqrt(var + BN_EPS) * gamma.reshape(1, -1, 1, 1)
         + beta.reshape(1, -1, 1, 1))

    def tconv_lrelu(hh, w_t, b):
        k = w_t.shape[2]
        q = k - 1 - pad
        w_eq = jnp.flip(w_t, axis=(2, 3)).transpose(1, 0, 2, 3)
        o = lax.conv_general_dilated(
            hh, w_eq, window_strides=(1, 1), padding=[(q, q), (q, q)],
            dimension_numbers=("NCHW", "OIHW", "NCHW"),
            precision=lax.Precision.HIGHEST)
        o = o + b.reshape(1, -1, 1, 1)
        return jnp.where(o >= 0, o, NEG_SLOPE * o)

    y = tconv_lrelu(y, w1_t, b1)
    y = tconv_lrelu(y, w2_t, b2)
    return y


if __name__ == "__main__":
    N, C_IN, C_OUT, H, W, K = 2, 4, 8, 16, 16, 3

    key = jax.random.PRNGKey(0)
    ks = jax.random.split(key, 5)
    x = jax.random.normal(ks[0], (N, C_IN, H, W), jnp.float32)
    # ConvTranspose2d weights: (in_channels, out_channels, kH, kW)
    w1 = jax.random.normal(ks[1], (C_IN, C_OUT, K, K), jnp.float32) * 0.1
    b1 = jax.random.normal(ks[2], (C_OUT,), jnp.float32) * 0.1
    w2 = jax.random.normal(ks[3], (C_OUT, C_OUT, K, K), jnp.float32) * 0.1
    b2 = jax.random.normal(ks[4], (C_OUT,), jnp.float32) * 0.1
    gamma = jnp.ones((C_IN,), jnp.float32)   # BatchNorm2d affine init
    beta = jnp.zeros((C_IN,), jnp.float32)

    out = decoder_forward(x, gamma, beta, w1, b1, w2, b2, K)
    out = jax.block_until_ready(out)

    # shape check: 16 -> interpolate(x2) 32 -> tconv(-2) 30 -> tconv(-2) 28
    assert out.shape == (N, C_OUT, 28, 28), out.shape

    ref = reference(x, gamma, beta, w1, b1, w2, b2, K)
    err = float(jnp.max(jnp.abs(out - ref)))
    assert err < 2e-3, f"max abs error {err}"

    print("KERNEL_OK")
</pallas_src>

<mosaic_0001>
module attributes {stable_mosaic.version = 11 : i64} {
  func.func @decoder_kernel(%arg0: memref<8x256xf32, #tpu.memory_space<vmem>>, %arg1: memref<256x1024xf32, #tpu.memory_space<vmem>>, %arg2: memref<8x8xf32, #tpu.memory_space<vmem>>, %arg3: memref<8x1xf32, #tpu.memory_space<vmem>>, %arg4: memref<8x1xf32, #tpu.memory_space<vmem>>, %arg5: memref<16x72xf32, #tpu.memory_space<vmem>>, %arg6: memref<16x1xf32, #tpu.memory_space<vmem>>, %arg7: memref<16x144xf32, #tpu.memory_space<vmem>>, %arg8: memref<16x1xf32, #tpu.memory_space<vmem>>, %arg9: memref<16x1024xf32, #tpu.memory_space<vmem>>) attributes {dimension_semantics = [], scalar_prefetch = 0 : i64, scratch_operands = 0 : i64, tpu.core_type = #tpu.core_type<tc>} {
    %c0 = arith.constant 0 : index
    %c0_0 = arith.constant 0 : index
    %0 = vector.load %arg0[%c0, %c0_0] : memref<8x256xf32, #tpu.memory_space<vmem>>, vector<8x256xf32>
    %c0_1 = arith.constant 0 : index
    %c0_2 = arith.constant 0 : index
    %1 = vector.load %arg1[%c0_1, %c0_2] : memref<256x1024xf32, #tpu.memory_space<vmem>>, vector<256x1024xf32>
    %cst = arith.constant dense<0.000000e+00> : vector<8x1024xf32>
    %2 = tpu.matmul %0, %1, %cst {dimension_numbers = #tpu.dot_dimension_numbers<[1], [0], [0], [1], [0, 0, 1, 1], [], []>} : vector<8x256xf32>, vector<256x1024xf32>, vector<8x1024xf32> -> vector<8x1024xf32>
    %c0_3 = arith.constant 0 : index
    %c0_4 = arith.constant 0 : index
    %3 = vector.load %arg2[%c0_3, %c0_4] : memref<8x8xf32, #tpu.memory_space<vmem>>, vector<8x8xf32>
    %cst_5 = arith.constant dense<0.000000e+00> : vector<8x1024xf32>
    %4 = tpu.matmul %3, %2, %cst_5 {dimension_numbers = #tpu.dot_dimension_numbers<[1], [0], [0], [1], [0, 0, 1, 1], [], []>} : vector<8x8xf32>, vector<8x1024xf32>, vector<8x1024xf32> -> vector<8x1024xf32>
    %c0_6 = arith.constant 0 : index
    %c0_7 = arith.constant 0 : index
    %5 = vector.load %arg2[%c0_6, %c0_7] : memref<8x8xf32, #tpu.memory_space<vmem>>, vector<8x8xf32>
    %6 = arith.mulf %2, %2 : vector<8x1024xf32>
    %cst_8 = arith.constant dense<0.000000e+00> : vector<8x1024xf32>
    %7 = tpu.matmul %5, %6, %cst_8 {dimension_numbers = #tpu.dot_dimension_numbers<[1], [0], [0], [1], [0, 0, 1, 1], [], []>} : vector<8x8xf32>, vector<8x1024xf32>, vector<8x1024xf32> -> vector<8x1024xf32>
    %cst_9 = arith.constant dense<0.000000e+00> : vector<8xf32>
    %8 = vector.multi_reduction <add>, %4, %cst_9 [1] : vector<8x1024xf32> to vector<8xf32>
    %9 = vector.shape_cast %8 : vector<8xf32> to vector<8x1xf32>
    %cst_10 = arith.constant 4.8828125E-4 : f32
    %10 = vector.broadcast %cst_10 : f32 to vector<8x1xf32>
    %11 = arith.mulf %9, %10 : vector<8x1xf32>
    %cst_11 = arith.constant dense<0.000000e+00> : vector<8xf32>
    %12 = vector.multi_reduction <add>, %7, %cst_11 [1] : vector<8x1024xf32> to vector<8xf32>
    %13 = vector.shape_cast %12 : vector<8xf32> to vector<8x1xf32>
    %cst_12 = arith.constant 4.8828125E-4 : f32
    %14 = vector.broadcast %cst_12 : f32 to vector<8x1xf32>
    %15 = arith.mulf %13, %14 : vector<8x1xf32>
    %16 = arith.mulf %11, %11 : vector<8x1xf32>
    %17 = arith.subf %15, %16 : vector<8x1xf32>
    %c0_13 = arith.constant 0 : index
    %c0_14 = arith.constant 0 : index
    %18 = vector.load %arg3[%c0_13, %c0_14] : memref<8x1xf32, #tpu.memory_space<vmem>>, vector<8x1xf32>
    %cst_15 = arith.constant 9.99999974E-6 : f32
    %19 = vector.broadcast %cst_15 : f32 to vector<8x1xf32>
    %20 = arith.addf %17, %19 : vector<8x1xf32>
    %21 = math.rsqrt %20 : vector<8x1xf32>
    %22 = arith.mulf %18, %21 : vector<8x1xf32>
    %c0_16 = arith.constant 0 : index
    %c0_17 = arith.constant 0 : index
    %23 = vector.load %arg4[%c0_16, %c0_17] : memref<8x1xf32, #tpu.memory_space<vmem>>, vector<8x1xf32>
    %24 = arith.mulf %11, %22 : vector<8x1xf32>
    %25 = arith.subf %23, %24 : vector<8x1xf32>
    %26 = vector.broadcast %22 : vector<8x1xf32> to vector<8x1024xf32>
    %27 = arith.mulf %2, %26 : vector<8x1024xf32>
    %28 = vector.broadcast %25 : vector<8x1xf32> to vector<8x1024xf32>
    %29 = arith.addf %27, %28 : vector<8x1024xf32>
    %cst_18 = arith.constant 0.000000e+00 : f32
    %30 = vector.broadcast %cst_18 : f32 to vector<8x128xf32>
    %31 = tpu.concatenate %29, %30 in 1 : vector<8x1024xf32>, vector<8x128xf32> -> vector<8x1152xf32>
    %32 = vector.extract_strided_slice %31 {offsets = [0, 0], sizes = [8, 1024], strides = [1, 1]} : vector<8x1152xf32> to vector<8x1024xf32>
    %33 = vector.extract_strided_slice %31 {offsets = [0, 1], sizes = [8, 1024], strides = [1, 1]} : vector<8x1152xf32> to vector<8x1024xf32>
    %34 = vector.extract_strided_slice %31 {offsets = [0, 2], sizes = [8, 1024], strides = [1, 1]} : vector<8x1152xf32> to vector<8x1024xf32>
    %35 = vector.extract_strided_slice %31 {offsets = [0, 32], sizes = [8, 1024], strides = [1, 1]} : vector<8x1152xf32> to vector<8x1024xf32>
    %36 = vector.extract_strided_slice %31 {offsets = [0, 33], sizes = [8, 1024], strides = [1, 1]} : vector<8x1152xf32> to vector<8x1024xf32>
    %37 = vector.extract_strided_slice %31 {offsets = [0, 34], sizes = [8, 1024], strides = [1, 1]} : vector<8x1152xf32> to vector<8x1024xf32>
    %38 = vector.extract_strided_slice %31 {offsets = [0, 64], sizes = [8, 1024], strides = [1, 1]} : vector<8x1152xf32> to vector<8x1024xf32>
    %39 = vector.extract_strided_slice %31 {offsets = [0, 65], sizes = [8, 1024], strides = [1, 1]} : vector<8x1152xf32> to vector<8x1024xf32>
    %40 = vector.extract_strided_slice %31 {offsets = [0, 66], sizes = [8, 1024], strides = [1, 1]} : vector<8x1152xf32> to vector<8x1024xf32>
    %41 = tpu.concatenate %32, %33, %34, %35, %36, %37, %38, %39, %40 in 0 : vector<8x1024xf32>, vector<8x1024xf32>, vector<8x1024xf32>, vector<8x1024xf32>, vector<8x1024xf32>, vector<8x1024xf32>, vector<8x1024xf32>, vector<8x1024xf32>, vector<8x1024xf32> -> vector<72x1024xf32>
    %c0_19 = arith.constant 0 : index
    %c0_20 = arith.constant 0 : index
    %42 = vector.load %arg5[%c0_19, %c0_20] : memref<16x72xf32, #tpu.memory_space<vmem>>, vector<16x72xf32>
    %cst_21 = arith.constant dense<0.000000e+00> : vector<16x1024xf32>
    %43 = tpu.matmul %42, %41, %cst_21 {dimension_numbers = #tpu.dot_dimension_numbers<[1], [0], [0], [1], [0, 0, 1, 1], [], []>} : vector<16x72xf32>, vector<72x1024xf32>, vector<16x1024xf32> -> vector<16x1024xf32>
    %c0_22 = arith.constant 0 : index
    %c0_23 = arith.constant 0 : index
    %44 = vector.load %arg6[%c0_22, %c0_23] : memref<16x1xf32, #tpu.memory_space<vmem>>, vector<16x1xf32>
    %45 = vector.broadcast %44 : vector<16x1xf32> to vector<16x1024xf32>
    %46 = arith.addf %43, %45 : vector<16x1024xf32>
    %cst_24 = arith.constant 0.00999999977 : f32
    %47 = vector.broadcast %cst_24 : f32 to vector<16x1024xf32>
    %48 = arith.mulf %47, %46 : vector<16x1024xf32>
    %49 = arith.maximumf %46, %48 : vector<16x1024xf32>
    %cst_25 = arith.constant 0.000000e+00 : f32
    %50 = vector.broadcast %cst_25 : f32 to vector<16x128xf32>
    %51 = tpu.concatenate %49, %50 in 1 : vector<16x1024xf32>, vector<16x128xf32> -> vector<16x1152xf32>
    %52 = vector.extract_strided_slice %51 {offsets = [0, 0], sizes = [16, 1024], strides = [1, 1]} : vector<16x1152xf32> to vector<16x1024xf32>
    %53 = vector.extract_strided_slice %51 {offsets = [0, 1], sizes = [16, 1024], strides = [1, 1]} : vector<16x1152xf32> to vector<16x1024xf32>
    %54 = vector.extract_strided_slice %51 {offsets = [0, 2], sizes = [16, 1024], strides = [1, 1]} : vector<16x1152xf32> to vector<16x1024xf32>
    %55 = vector.extract_strided_slice %51 {offsets = [0, 32], sizes = [16, 1024], strides = [1, 1]} : vector<16x1152xf32> to vector<16x1024xf32>
    %56 = vector.extract_strided_slice %51 {offsets = [0, 33], sizes = [16, 1024], strides = [1, 1]} : vector<16x1152xf32> to vector<16x1024xf32>
    %57 = vector.extract_strided_slice %51 {offsets = [0, 34], sizes = [16, 1024], strides = [1, 1]} : vector<16x1152xf32> to vector<16x1024xf32>
    %58 = vector.extract_strided_slice %51 {offsets = [0, 64], sizes = [16, 1024], strides = [1, 1]} : vector<16x1152xf32> to vector<16x1024xf32>
    %59 = vector.extract_strided_slice %51 {offsets = [0, 65], sizes = [16, 1024], strides = [1, 1]} : vector<16x1152xf32> to vector<16x1024xf32>
    %60 = vector.extract_strided_slice %51 {offsets = [0, 66], sizes = [16, 1024], strides = [1, 1]} : vector<16x1152xf32> to vector<16x1024xf32>
    %61 = tpu.concatenate %52, %53, %54, %55, %56, %57, %58, %59, %60 in 0 : vector<16x1024xf32>, vector<16x1024xf32>, vector<16x1024xf32>, vector<16x1024xf32>, vector<16x1024xf32>, vector<16x1024xf32>, vector<16x1024xf32>, vector<16x1024xf32>, vector<16x1024xf32> -> vector<144x1024xf32>
    %c0_26 = arith.constant 0 : index
    %c0_27 = arith.constant 0 : index
    %62 = vector.load %arg7[%c0_26, %c0_27] : memref<16x144xf32, #tpu.memory_space<vmem>>, vector<16x144xf32>
    %cst_28 = arith.constant dense<0.000000e+00> : vector<16x1024xf32>
    %63 = tpu.matmul %62, %61, %cst_28 {dimension_numbers = #tpu.dot_dimension_numbers<[1], [0], [0], [1], [0, 0, 1, 1], [], []>} : vector<16x144xf32>, vector<144x1024xf32>, vector<16x1024xf32> -> vector<16x1024xf32>
    %c0_29 = arith.constant 0 : index
    %c0_30 = arith.constant 0 : index
    %64 = vector.load %arg8[%c0_29, %c0_30] : memref<16x1xf32, #tpu.memory_space<vmem>>, vector<16x1xf32>
    %65 = vector.broadcast %64 : vector<16x1xf32> to vector<16x1024xf32>
    %66 = arith.addf %63, %65 : vector<16x1024xf32>
    %cst_31 = arith.constant 0.00999999977 : f32
    %67 = vector.broadcast %cst_31 : f32 to vector<16x1024xf32>
    %68 = arith.mulf %67, %66 : vector<16x1024xf32>
    %69 = arith.maximumf %66, %68 : vector<16x1024xf32>
    %c0_32 = arith.constant 0 : index
    %c0_33 = arith.constant 0 : index
    %70 = vector.load %arg9[%c0_32, %c0_33] : memref<16x1024xf32, #tpu.memory_space<vmem>>, vector<16x1024xf32>
    tpu.vector_store %arg9[%c0_32, %c0_33], %69 {strides = array<i32>} : memref<16x1024xf32, #tpu.memory_space<vmem>>, vector<16x1024xf32>,
    return
  }
}

</mosaic_0001>

<llo_original>
// kernel: tile.33
$region0: #{tile.33}
  #allocation0 [shape = 's32[1]{0}', space=sflag, size = 0x4, scoped, tag = 'scoped memory for tile.33']
  %s0 = inlined_call_operand.vmem [shape: f32[4], index: 0, kind: input, shape index: {}]
  %s1 = inlined_call_operand.vmem [shape: f32[2,4], index: 1, kind: output, shape index: {}]
  // Predicated region
  $region2: #{tile.33} parent=0 // pred_check
    _
  $region3: #{tile.33} parent=0 // pred_check_branch
    %3 = sbr.rel (0) target = $region5
  $region4: #{tile.33} parent=0 // pred_region
    _
  $region5: #{tile.33} parent=0 // pred_fallthru
    _
  %v4 = vld [vmem:[%s0] ss:$0 sm:$0xff]
  %5 = vst [vmem:[%s1] sm:$0x3] %v4

// kernel: tile.23
$region0: #{tile.23}
  #allocation0 [shape = 's32[1]{0}', space=sflag, size = 0x4, scoped, tag = 'scoped memory for tile.23']
  %s0 = inlined_call_operand.vmem [shape: f32[8], index: 0, kind: input, shape index: {}]
  %s1 = inlined_call_operand.vmem [shape: f32[2,8], index: 1, kind: output, shape index: {}]
  // Predicated region
  $region2: #{tile.23} parent=0 // pred_check
    _
  $region3: #{tile.23} parent=0 // pred_check_branch
    %3 = sbr.rel (0) target = $region5
  $region4: #{tile.23} parent=0 // pred_region
    _
  $region5: #{tile.23} parent=0 // pred_fallthru
    _
  %v4 = vld [vmem:[%s0] ss:$0 sm:$0xff]
  %5 = vst [vmem:[%s1] sm:$0x3] %v4

// kernel: tile.1
$region0: #{tile.1}
  %s0 = inlined_call_operand.vmem [shape: f32[2,4], index: 0, kind: input, shape index: {}]
  %s1 = inlined_call_operand.vmem [shape: f32[8,1], index: 1, kind: output, shape index: {}]
  $region1: #{tile.1} parent=0
    #allocation0 [shape = 'u8[4096]{0}', space=vmem, size = 0x1000, scoped, tag = 'scoped mem for input reshape']
    %s3 = sshllo.u32 0, 2
    %v4 = vld [vmem:[%s0] sm:%s3]
    %5 = vst [vmem:[#allocation0] sm:%s3] %v4
    %v6 = vld [vmem:[#allocation0] sm:$0x3]
    %vm7 = vcmask 7168
    %8 = vst.msk [vmem:[%s1] ss:$4 sm:$0x3] %vm7, %v6
    %v9 = vld [vmem:[#allocation0] sm:$0x3]
    %10 = vrot.lane.b32.xlu0 %v9, 127
    %v11 = vpop.permute.xlu0 %10
    %vm12 = vcmask 7168
    %s13 = scalar_lea.vmem %s1, 1
    %14 = vst.msk [vmem:[%s13] ss:$4 sm:$0x3] %vm12, %v11
    %v15 = vld [vmem:[#allocation0] sm:$0x3]
    %16 = vrot.lane.b32.xlu0 %v15, 126
    %v17 = vpop.permute.xlu0 %16
    %vm18 = vcmask 7168
    %s19 = scalar_lea.vmem %s1, 2
    %20 = vst.msk [vmem:[%s19] ss:$4 sm:$0x3] %vm18, %v17
    %v21 = vld [vmem:[#allocation0] sm:$0x3]
    %22 = vrot.lane.b32.xlu0 %v21, 125
    %v23 = vpop.permute.xlu0 %22
    %vm24 = vcmask 7168
    %s25 = scalar_lea.vmem %s1, 3
    %26 = vst.msk [vmem:[%s25] ss:$4 sm:$0x3] %vm24, %v23

// kernel: tile.3
$region0: #{tile.3}
  %s0 = inlined_call_operand.vmem [shape: f32[2,8], index: 0, kind: input, shape index: {}]
  %s1 = inlined_call_operand.vmem [shape: f32[16,1], index: 1, kind: output, shape index: {}]
  $region1: #{tile.3} parent=0
    #allocation0 [shape = 'u8[4096]{0}', space=vmem, size = 0x1000, scoped, tag = 'scoped mem for input reshape']
    %s3 = sshllo.u32 0, 2
    %v4 = vld [vmem:[%s0] sm:%s3]
    %5 = vst [vmem:[#allocation0] sm:%s3] %v4
    %v6 = vld [vmem:[#allocation0] sm:$0x3]
    %vm7 = vcmask 7168
    %8 = vst.msk [vmem:[%s1] ss:$8 sm:$0x3] %vm7, %v6
    %v9 = vld [vmem:[#allocation0] sm:$0x3]
    %10 = vrot.lane.b32.xlu0 %v9, 127
    %v11 = vpop.permute.xlu0 %10
    %vm12 = vcmask 7168
    %s13 = scalar_lea.vmem %s1, 1
    %14 = vst.msk [vmem:[%s13] ss:$8 sm:$0x3] %vm12, %v11
    %v15 = vld [vmem:[#allocation0] sm:$0x3]
    %16 = vrot.lane.b32.xlu0 %v15, 126
    %v17 = vpop.permute.xlu0 %16
    %vm18 = vcmask 7168
    %s19 = scalar_lea.vmem %s1, 2
    %20 = vst.msk [vmem:[%s19] ss:$8 sm:$0x3] %vm18, %v17
    %v21 = vld [vmem:[#allocation0] sm:$0x3]
    %22 = vrot.lane.b32.xlu0 %v21, 125
    %v23 = vpop.permute.xlu0 %22
    %vm24 = vcmask 7168
    %s25 = scalar_lea.vmem %s1, 3
    %26 = vst.msk [vmem:[%s25] ss:$8 sm:$0x3] %vm24, %v23
    %v27 = vld [vmem:[#allocation0] sm:$0x3]
    %28 = vrot.lane.b32.xlu0 %v27, 124
    %v29 = vpop.permute.xlu0 %28
    %vm30 = vcmask 7168
    %s31 = scalar_lea.vmem %s1, 4
    %32 = vst.msk [vmem:[%s31] ss:$8 sm:$0x3] %vm30, %v29
    %v33 = vld [vmem:[#allocation0] sm:$0x3]
    %34 = vrot.lane.b32.xlu0 %v33, 123
    %v35 = vpop.permute.xlu0 %34
    %vm36 = vcmask 7168
    %s37 = scalar_lea.vmem %s1, 5
    %38 = vst.msk [vmem:[%s37] ss:$8 sm:$0x3] %vm36, %v35
    %v39 = vld [vmem:[#allocation0] sm:$0x3]
    %40 = vrot.lane.b32.xlu0 %v39, 122
    %v41 = vpop.permute.xlu0 %40
    %vm42 = vcmask 7168
    %s43 = scalar_lea.vmem %s1, 6
    %44 = vst.msk [vmem:[%s43] ss:$8 sm:$0x3] %vm42, %v41
    %v45 = vld [vmem:[#allocation0] sm:$0x3]
    %46 = vrot.lane.b32.xlu0 %v45, 121
    %v47 = vpop.permute.xlu0 %46
    %vm48 = vcmask 7168
    %s49 = scalar_lea.vmem %s1, 7
    %50 = vst.msk [vmem:[%s49] ss:$8 sm:$0x3] %vm48, %v47

// kernel: decoder_forward.1
$region0: #{decoder_forward.1}
  #allocation0 [shape = 'u32[]', space=smem, size = 0x4, offset = 0x4, fixed_abs, tag = 'smem constant byte address 0x4 - core index']
  #allocation1 [shape = 'u32[144,128]{1,0:T(1,128)}', space=vmem, size = 0x12000, scoped, tag = 'internal scratch']
  %s0 = inlined_call_operand.vmem [shape: f32[8,256], index: 0, kind: input, shape index: {}]
  %s1 = inlined_call_operand.hbm [shape: f32[256,1024], index: 1, kind: input, shape index: {}]
  %s2 = inlined_call_operand.vmem [shape: f32[8,8], index: 2, kind: input, shape index: {}]
  %s3 = inlined_call_operand.vmem [shape: f32[8,1], index: 3, kind: input, shape index: {}]
  %s4 = inlined_call_operand.vmem [shape: f32[8,1], index: 4, kind: input, shape index: {}]
  %s5 = inlined_call_operand.vmem [shape: f32[16,72], index: 5, kind: input, shape index: {}]
  %s6 = inlined_call_operand.vmem [shape: f32[16,1], index: 6, kind: input, shape index: {}]
  %s7 = inlined_call_operand.vmem [shape: f32[16,144], index: 7, kind: input, shape index: {}]
  %s8 = inlined_call_operand.vmem [shape: f32[16,1], index: 8, kind: input, shape index: {}]
  %s9 = inlined_call_operand.vmem [shape: f32[16,1024], index: 9, kind: output, shape index: {}]
  %s10 = sld [smem:[#allocation0]]
  $region50: #{decoder_forward.1} parent=0
    _
  %s12 = ssub.s32 1, %s10
  %s13 = scalar_select 0, %s12, %s10
  $region1: #{decoder_forward.1} parent=0
    #allocation2 [shape = 'u8[1048576]{0}', space=vmem, size = 0x100000, scoped, tag = 'input window, operand 1, single buffered']
    #allocation3 [shape = 's32[1]{0}', space=sflag, size = 0x4, scoped, tag = 'scoped memory for decoder_forward.1']
    %14 = vsyncpa [#allocation3], 0
    // Predicated region
    $region2: #{decoder_forward.1} parent=1 // pred_check
      _
    $region3: #{decoder_forward.1} parent=1 // pred_check_branch
      %16 = sbr.rel (0) target = $region5
    $region4: #{decoder_forward.1} parent=1 // pred_region
      _
    $region5: #{decoder_forward.1} parent=1 // pred_fallthru
      _
    // Predicated region
    $region6: #{decoder_forward.1} parent=1 // pred_check
      _
    $region7: #{decoder_forward.1} parent=1 // pred_check_branch
      %18 = sbr.rel (0) target = $region9
    $region8: #{decoder_forward.1} parent=1 // pred_region
      %s20 = ssub.s32 32768, 32768
      %21 = vsyncadd [#allocation3], %s20
      %s22 = sshll.u32 [#allocation2], 4
      %s23 = int_to_ptr.vmem [resolvable:$true] %s22
      %28 = dma.hbm_to_vmem [thread:$0]  %s1, 32768, %s23, [#allocation3], 1024, 1024, 64
    $region9: #{decoder_forward.1} parent=1 // pred_fallthru
      _
    // Predicated region
    $region10: #{decoder_forward.1} parent=1 // pred_check
      _
    $region11: #{decoder_forward.1} parent=1 // pred_check_branch
      %30 = sbr.rel (0) target = $region13
    $region12: #{decoder_forward.1} parent=1 // pred_region
      _
    $region13: #{decoder_forward.1} parent=1 // pred_fallthru
      _
    // Predicated region
    $region14: #{decoder_forward.1} parent=1 // pred_check
      _
    $region15: #{decoder_forward.1} parent=1 // pred_check_branch
      %32 = sbr.rel (0) target = $region17
    $region16: #{decoder_forward.1} parent=1 // pred_region
      _
    $region17: #{decoder_forward.1} parent=1 // pred_fallthru
      _
    // Predicated region
    $region18: #{decoder_forward.1} parent=1 // pred_check
      _
    $region19: #{decoder_forward.1} parent=1 // pred_check_branch
      %34 = sbr.rel (0) target = $region21
    $region20: #{decoder_forward.1} parent=1 // pred_region
      _
    $region21: #{decoder_forward.1} parent=1 // pred_fallthru
      _
    // Predicated region
    $region22: #{decoder_forward.1} parent=1 // pred_check
      _
    $region23: #{decoder_forward.1} parent=1 // pred_check_branch
      %36 = sbr.rel (0) target = $region25
    $region24: #{decoder_forward.1} parent=1 // pred_region
      _
    $region25: #{decoder_forward.1} parent=1 // pred_fallthru
      _
    // Predicated region
    $region26: #{decoder_forward.1} parent=1 // pred_check
      _
    $region27: #{decoder_forward.1} parent=1 // pred_check_branch
      %38 = sbr.rel (0) target = $region29
    $region28: #{decoder_forward.1} parent=1 // pred_region
      _
    $region29: #{decoder_forward.1} parent=1 // pred_fallthru
      _
    // Predicated region
    $region30: #{decoder_forward.1} parent=1 // pred_check
      _
    $region31: #{decoder_forward.1} parent=1 // pred_check_branch
      %40 = sbr.rel (0) target = $region33
    $region32: #{decoder_forward.1} parent=1 // pred_region
      _
    $region33: #{decoder_forward.1} parent=1 // pred_fallthru
      _
    // Predicated region
    $region34: #{decoder_forward.1} parent=1 // pred_check
      _
    $region35: #{decoder_forward.1} parent=1 // pred_check_branch
      %42 = sbr.rel (0) target = $region37
    $region36: #{decoder_forward.1} parent=1 // pred_region
      _
    $region37: #{decoder_forward.1} parent=1 // pred_fallthru
      _
    // Predicated region
    $region38: #{decoder_forward.1} parent=1 // pred_check
      _
    $region39: #{decoder_forward.1} parent=1 // pred_check_branch
      %44 = sbr.rel (0) target = $region41
    $region40: #{decoder_forward.1} parent=1 // pred_region
      %45 = dma.done [#allocation3], 32768
    $region41: #{decoder_forward.1} parent=1 // pred_fallthru
      _
    %v46 = vld [vmem:[%s0] sm:$0xff]
    %v47 = vld [vmem:[%s0 + $0x8] sm:$0xff]
    %v48 = vld [vmem:[#allocation2] sm:$0xff]
    %v49 = vld [vmem:[#allocation2 + $0x8] sm:$0xff]
    %v50 = vld [vmem:[#allocation2 + $0x10] sm:$0xff]
    %v51 = vld [vmem:[#allocation2 + $0x18] sm:$0xff]
    %v52 = vld [vmem:[#allocation2 + $0x20] sm:$0xff]
    %v53 = vld [vmem:[#allocation2 + $0x28] sm:$0xff]
    %v54 = vld [vmem:[#allocation2 + $0x30] sm:$0xff]
    %v55 = vld [vmem:[#allocation2 + $0x38] sm:$0xff]
    %v56 = vld [vmem:[#allocation2 + $0x40] sm:$0xff]
    %v57 = vld [vmem:[#allocation2 + $0x48] sm:$0xff]
    %v58 = vld [vmem:[#allocation2 + $0x50] sm:$0xff]
    %v59 = vld [vmem:[#allocation2 + $0x58] sm:$0xff]
    %v60 = vld [vmem:[#allocation2 + $0x60] sm:$0xff]
    %v61 = vld [vmem:[#allocation2 + $0x68] sm:$0xff]
    %v62 = vld [vmem:[#allocation2 + $0x70] sm:$0xff]
    %v63 = vld [vmem:[#allocation2 + $0x78] sm:$0xff]
    %v64 = vld [vmem:[#allocation2 + $0x80] sm:$0xff]
    %v65 = vld [vmem:[#allocation2 + $0x88] sm:$0xff]
    %v66 = vld [vmem:[#allocation2 + $0x90] sm:$0xff]
    %v67 = vld [vmem:[#allocation2 + $0x98] sm:$0xff]
    %v68 = vld [vmem:[#allocation2 + $0xa0] sm:$0xff]
    %v69 = vld [vmem:[#allocation2 + $0xa8] sm:$0xff]
    %v70 = vld [vmem:[#allocation2 + $0xb0] sm:$0xff]
    %v71 = vld [vmem:[#allocation2 + $0xb8] sm:$0xff]
    %v72 = vld [vmem:[#allocation2 + $0xc0] sm:$0xff]
    %v73 = vld [vmem:[#allocation2 + $0xc8] sm:$0xff]
    %v74 = vld [vmem:[#allocation2 + $0xd0] sm:$0xff]
    %v75 = vld [vmem:[#allocation2 + $0xd8] sm:$0xff]
    %v76 = vld [vmem:[#allocation2 + $0xe0] sm:$0xff]
    %v77 = vld [vmem:[#allocation2 + $0xe8] sm:$0xff]
    %v78 = vld [vmem:[#allocation2 + $0xf0] sm:$0xff]
    %v79 = vld [vmem:[#allocation2 + $0xf8] sm:$0xff]
    %v80 = vld [vmem:[#allocation2 + $0x100] sm:$0xff]
    %v81 = vld [vmem:[#allocation2 + $0x108] sm:$0xff]
    %v82 = vld [vmem:[#allocation2 + $0x110] sm:$0xff]
    %v83 = vld [vmem:[#allocation2 + $0x118] sm:$0xff]
    %v84 = vld [vmem:[#allocation2 + $0x120] sm:$0xff]
    %v85 = vld [vmem:[#allocation2 + $0x128] sm:$0xff]
    %v86 = vld [vmem:[#allocation2 + $0x130] sm:$0xff]
    %v87 = vld [vmem:[#allocation2 + $0x138] sm:$0xff]
    %v88 = vld [vmem:[#allocation2 + $0x140] sm:$0xff]
    %v89 = vld [vmem:[#allocation2 + $0x148] sm:$0xff]
    %v90 = vld [vmem:[#allocation2 + $0x150] sm:$0xff]
    %v91 = vld [vmem:[#allocation2 + $0x158] sm:$0xff]
    %v92 = vld [vmem:[#allocation2 + $0x160] sm:$0xff]
    %v93 = vld [vmem:[#allocation2 + $0x168] sm:$0xff]
    %v94 = vld [vmem:[#allocation2 + $0x170] sm:$0xff]
    %v95 = vld [vmem:[#allocation2 + $0x178] sm:$0xff]
    %v96 = vld [vmem:[#allocation2 + $0x180] sm:$0xff]
    %v97 = vld [vmem:[#allocation2 + $0x188] sm:$0xff]
    %v98 = vld [vmem:[#allocation2 + $0x190] sm:$0xff]
    %v99 = vld [vmem:[#allocation2 + $0x198] sm:$0xff]
    %v100 = vld [vmem:[#allocation2 + $0x1a0] sm:$0xff]
    %v101 = vld [vmem:[#allocation2 + $0x1a8] sm:$0xff]
    %v102 = vld [vmem:[#allocation2 + $0x1b0] sm:$0xff]
    %v103 = vld [vmem:[#allocation2 + $0x1b8] sm:$0xff]
    %v104 = vld [vmem:[#allocation2 + $0x1c0] sm:$0xff]
    %v105 = vld [vmem:[#allocation2 + $0x1c8] sm:$0xff]
    %v106 = vld [vmem:[#allocation2 + $0x1d0] sm:$0xff]
    %v107 = vld [vmem:[#allocation2 + $0x1d8] sm:$0xff]
    %v108 = vld [vmem:[#allocation2 + $0x1e0] sm:$0xff]
    %v109 = vld [vmem:[#allocation2 + $0x1e8] sm:$0xff]
    %v110 = vld [vmem:[#allocation2 + $0x1f0] sm:$0xff]
    %v111 = vld [vmem:[#allocation2 + $0x1f8] sm:$0xff]
    %v112 = vld [vmem:[#allocation2 + $0x200] sm:$0xff]
    %v113 = vld [vmem:[#allocation2 + $0x208] sm:$0xff]
    %v114 = vld [vmem:[#allocation2 + $0x210] sm:$0xff]
    %v115 = vld [vmem:[#allocation2 + $0x218] sm:$0xff]
    %v116 = vld [vmem:[#allocation2 + $0x220] sm:$0xff]
    %v117 = vld [vmem:[#allocation2 + $0x228] sm:$0xff]
    %v118 = vld [vmem:[#allocation2 + $0x230] sm:$0xff]
    %v119 = vld [vmem:[#allocation2 + $0x238] sm:$0xff]
    %v120 = vld [vmem:[#allocation2 + $0x240] sm:$0xff]
    %v121 = vld [vmem:[#allocation2 + $0x248] sm:$0xff]
    %v122 = vld [vmem:[#allocation2 + $0x250] sm:$0xff]
    %v123 = vld [vmem:[#allocation2 + $0x258] sm:$0xff]
    %v124 = vld [vmem:[#allocation2 + $0x260] sm:$0xff]
    %v125 = vld [vmem:[#allocation2 + $0x268] sm:$0xff]
    %v126 = vld [vmem:[#allocation2 + $0x270] sm:$0xff]
    %v127 = vld [vmem:[#allocation2 + $0x278] sm:$0xff]
    %v128 = vld [vmem:[#allocation2 + $0x280] sm:$0xff]
    %v129 = vld [vmem:[#allocation2 + $0x288] sm:$0xff]
    %v130 = vld [vmem:[#allocation2 + $0x290] sm:$0xff]
    %v131 = vld [vmem:[#allocation2 + $0x298] sm:$0xff]
    %v132 = vld [vmem:[#allocation2 + $0x2a0] sm:$0xff]
    %v133 = vld [vmem:[#allocation2 + $0x2a8] sm:$0xff]
    %v134 = vld [vmem:[#allocation2 + $0x2b0] sm:$0xff]
    %v135 = vld [vmem:[#allocation2 + $0x2b8] sm:$0xff]
    %v136 = vld [vmem:[#allocation2 + $0x2c0] sm:$0xff]
    %v137 = vld [vmem:[#allocation2 + $0x2c8] sm:$0xff]
    %v138 = vld [vmem:[#allocation2 + $0x2d0] sm:$0xff]
    %v139 = vld [vmem:[#allocation2 + $0x2d8] sm:$0xff]
    %v140 = vld [vmem:[#allocation2 + $0x2e0] sm:$0xff]
    %v141 = vld [vmem:[#allocation2 + $0x2e8] sm:$0xff]
    %v142 = vld [vmem:[#allocation2 + $0x2f0] sm:$0xff]
    %v143 = vld [vmem:[#allocation2 + $0x2f8] sm:$0xff]
    %v144 = vld [vmem:[#allocation2 + $0x300] sm:$0xff]
    %v145 = vld [vmem:[#allocation2 + $0x308] sm:$0xff]
    %v146 = vld [vmem:[#allocation2 + $0x310] sm:$0xff]
    %v147 = vld [vmem:[#allocation2 + $0x318] sm:$0xff]
    %v148 = vld [vmem:[#allocation2 + $0x320] sm:$0xff]
    %v149 = vld [vmem:[#allocation2 + $0x328] sm:$0xff]
    %v150 = vld [vmem:[#allocation2 + $0x330] sm:$0xff]
    %v151 = vld [vmem:[#allocation2 + $0x338] sm:$0xff]
    %v152 = vld [vmem:[#allocation2 + $0x340] sm:$0xff]
    %v153 = vld [vmem:[#allocation2 + $0x348] sm:$0xff]
    %v154 = vld [vmem:[#allocation2 + $0x350] sm:$0xff]
    %v155 = vld [vmem:[#allocation2 + $0x358] sm:$0xff]
    %v156 = vld [vmem:[#allocation2 + $0x360] sm:$0xff]
    %v157 = vld [vmem:[#allocation2 + $0x368] sm:$0xff]
    %v158 = vld [vmem:[#allocation2 + $0x370] sm:$0xff]
    %v159 = vld [vmem:[#allocation2 + $0x378] sm:$0xff]
    %v160 = vld [vmem:[#allocation2 + $0x380] sm:$0xff]
    %v161 = vld [vmem:[#allocation2 + $0x388] sm:$0xff]
    %v162 = vld [vmem:[#allocation2 + $0x390] sm:$0xff]
    %v163 = vld [vmem:[#allocation2 + $0x398] sm:$0xff]
    %v164 = vld [vmem:[#allocation2 + $0x3a0] sm:$0xff]
    %v165 = vld [vmem:[#allocation2 + $0x3a8] sm:$0xff]
    %v166 = vld [vmem:[#allocation2 + $0x3b0] sm:$0xff]
    %v167 = vld [vmem:[#allocation2 + $0x3b8] sm:$0xff]
    %v168 = vld [vmem:[#allocation2 + $0x3c0] sm:$0xff]
    %v169 = vld [vmem:[#allocation2 + $0x3c8] sm:$0xff]
    %v170 = vld [vmem:[#allocation2 + $0x3d0] sm:$0xff]
    %v171 = vld [vmem:[#allocation2 + $0x3d8] sm:$0xff]
    %v172 = vld [vmem:[#allocation2 + $0x3e0] sm:$0xff]
    %v173 = vld [vmem:[#allocation2 + $0x3e8] sm:$0xff]
    %v174 = vld [vmem:[#allocation2 + $0x3f0] sm:$0xff]
    %v175 = vld [vmem:[#allocation2 + $0x3f8] sm:$0xff]
    %v176 = vld [vmem:[#allocation2 + $0x400] sm:$0xff]
    %v177 = vld [vmem:[#allocation2 + $0x408] sm:$0xff]
    %v178 = vld [vmem:[#allocation2 + $0x410] sm:$0xff]
    %v179 = vld [vmem:[#allocation2 + $0x418] sm:$0xff]
    %v180 = vld [vmem:[#allocation2 + $0x420] sm:$0xff]
    %v181 = vld [vmem:[#allocation2 + $0x428] sm:$0xff]
    %v182 = vld [vmem:[#allocation2 + $0x430] sm:$0xff]
    %v183 = vld [vmem:[#allocation2 + $0x438] sm:$0xff]
    %v184 = vld [vmem:[#allocation2 + $0x440] sm:$0xff]
    %v185 = vld [vmem:[#allocation2 + $0x448] sm:$0xff]
    %v186 = vld [vmem:[#allocation2 + $0x450] sm:$0xff]
    %v187 = vld [vmem:[#allocation2 + $0x458] sm:$0xff]
    %v188 = vld [vmem:[#allocation2 + $0x460] sm:$0xff]
    %v189 = vld [vmem:[#allocation2 + $0x468] sm:$0xff]
    %v190 = vld [vmem:[#allocation2 + $0x470] sm:$0xff]
    %v191 = vld [vmem:[#allocation2 + $0x478] sm:$0xff]
    %v192 = vld [vmem:[#allocation2 + $0x480] sm:$0xff]
    %v193 = vld [vmem:[#allocation2 + $0x488] sm:$0xff]
    %v194 = vld [vmem:[#allocation2 + $0x490] sm:$0xff]
    %v195 = vld [vmem:[#allocation2 + $0x498] sm:$0xff]
    %v196 = vld [vmem:[#allocation2 + $0x4a0] sm:$0xff]
    %v197 = vld [vmem:[#allocation2 + $0x4a8] sm:$0xff]
    %v198 = vld [vmem:[#allocation2 + $0x4b0] sm:$0xff]
    %v199 = vld [vmem:[#allocation2 + $0x4b8] sm:$0xff]
    %v200 = vld [vmem:[#allocation2 + $0x4c0] sm:$0xff]
    %v201 = vld [vmem:[#allocation2 + $0x4c8] sm:$0xff]
    %v202 = vld [vmem:[#allocation2 + $0x4d0] sm:$0xff]
    %v203 = vld [vmem:[#allocation2 + $0x4d8] sm:$0xff]
    %v204 = vld [vmem:[#allocation2 + $0x4e0] sm:$0xff]
    %v205 = vld [vmem:[#allocation2 + $0x4e8] sm:$0xff]
    %v206 = vld [vmem:[#allocation2 + $0x4f0] sm:$0xff]
    %v207 = vld [vmem:[#allocation2 + $0x4f8] sm:$0xff]
    %v208 = vld [vmem:[#allocation2 + $0x500] sm:$0xff]
    %v209 = vld [vmem:[#allocation2 + $0x508] sm:$0xff]
    %v210 = vld [vmem:[#allocation2 + $0x510] sm:$0xff]
    %v211 = vld [vmem:[#allocation2 + $0x518] sm:$0xff]
    %v212 = vld [vmem:[#allocation2 + $0x520] sm:$0xff]
    %v213 = vld [vmem:[#allocation2 + $0x528] sm:$0xff]
    %v214 = vld [vmem:[#allocation2 + $0x530] sm:$0xff]
    %v215 = vld [vmem:[#allocation2 + $0x538] sm:$0xff]
    %v216 = vld [vmem:[#allocation2 + $0x540] sm:$0xff]
    %v217 = vld [vmem:[#allocation2 + $0x548] sm:$0xff]
    %v218 = vld [vmem:[#allocation2 + $0x550] sm:$0xff]
    %v219 = vld [vmem:[#allocation2 + $0x558] sm:$0xff]
    %v220 = vld [vmem:[#allocation2 + $0x560] sm:$0xff]
    %v221 = vld [vmem:[#allocation2 + $0x568] sm:$0xff]
    %v222 = vld [vmem:[#allocation2 + $0x570] sm:$0xff]
    %v223 = vld [vmem:[#allocation2 + $0x578] sm:$0xff]
    %v224 = vld [vmem:[#allocation2 + $0x580] sm:$0xff]
    %v225 = vld [vmem:[#allocation2 + $0x588] sm:$0xff]
    %v226 = vld [vmem:[#allocation2 + $0x590] sm:$0xff]
    %v227 = vld [vmem:[#allocation2 + $0x598] sm:$0xff]
    %v228 = vld [vmem:[#allocation2 + $0x5a0] sm:$0xff]
    %v229 = vld [vmem:[#allocation2 + $0x5a8] sm:$0xff]
    %v230 = vld [vmem:[#allocation2 + $0x5b0] sm:$0xff]
    %v231 = vld [vmem:[#allocation2 + $0x5b8] sm:$0xff]
    %v232 = vld [vmem:[#allocation2 + $0x5c0] sm:$0xff]
    %v233 = vld [vmem:[#allocation2 + $0x5c8] sm:$0xff]
    %v234 = vld [vmem:[#allocation2 + $0x5d0] sm:$0xff]
    %v235 = vld [vmem:[#allocation2 + $0x5d8] sm:$0xff]
    %v236 = vld [vmem:[#allocation2 + $0x5e0] sm:$0xff]
    %v237 = vld [vmem:[#allocation2 + $0x5e8] sm:$0xff]
    %v238 = vld [vmem:[#allocation2 + $0x5f0] sm:$0xff]
    %v239 = vld [vmem:[#allocation2 + $0x5f8] sm:$0xff]
    %v240 = vld [vmem:[#allocation2 + $0x600] sm:$0xff]
    %v241 = vld [vmem:[#allocation2 + $0x608] sm:$0xff]
    %v242 = vld [vmem:[#allocation2 + $0x610] sm:$0xff]
    %v243 = vld [vmem:[#allocation2 + $0x618] sm:$0xff]
    %v244 = vld [vmem:[#allocation2 + $0x620] sm:$0xff]
    %v245 = vld [vmem:[#allocation2 + $0x628] sm:$0xff]
    %v246 = vld [vmem:[#allocation2 + $0x630] sm:$0xff]
    %v247 = vld [vmem:[#allocation2 + $0x638] sm:$0xff]
    %v248 = vld [vmem:[#allocation2 + $0x640] sm:$0xff]
    %v249 = vld [vmem:[#allocation2 + $0x648] sm:$0xff]
    %v250 = vld [vmem:[#allocation2 + $0x650] sm:$0xff]
    %v251 = vld [vmem:[#allocation2 + $0x658] sm:$0xff]
    %v252 = vld [vmem:[#allocation2 + $0x660] sm:$0xff]
    %v253 = vld [vmem:[#allocation2 + $0x668] sm:$0xff]
    %v254 = vld [vmem:[#allocation2 + $0x670] sm:$0xff]
    %v255 = vld [vmem:[#allocation2 + $0x678] sm:$0xff]
    %v256 = vld [vmem:[#allocation2 + $0x680] sm:$0xff]
    %v257 = vld [vmem:[#allocation2 + $0x688] sm:$0xff]
    %v258 = vld [vmem:[#allocation2 + $0x690] sm:$0xff]
    %v259 = vld [vmem:[#allocation2 + $0x698] sm:$0xff]
    %v260 = vld [vmem:[#allocation2 + $0x6a0] sm:$0xff]
    %v261 = vld [vmem:[#allocation2 + $0x6a8] sm:$0xff]
    %v262 = vld [vmem:[#allocation2 + $0x6b0] sm:$0xff]
    %v263 = vld [vmem:[#allocation2 + $0x6b8] sm:$0xff]
    %v264 = vld [vmem:[#allocation2 + $0x6c0] sm:$0xff]
    %v265 = vld [vmem:[#allocation2 + $0x6c8] sm:$0xff]
    %v266 = vld [vmem:[#allocation2 + $0x6d0] sm:$0xff]
    %v267 = vld [vmem:[#allocation2 + $0x6d8] sm:$0xff]
    %v268 = vld [vmem:[#allocation2 + $0x6e0] sm:$0xff]
    %v269 = vld [vmem:[#allocation2 + $0x6e8] sm:$0xff]
    %v270 = vld [vmem:[#allocation2 + $0x6f0] sm:$0xff]
    %v271 = vld [vmem:[#allocation2 + $0x6f8] sm:$0xff]
    %v272 = vld [vmem:[#allocation2 + $0x700] sm:$0xff]
    %v273 = vld [vmem:[#allocation2 + $0x708] sm:$0xff]
    %v274 = vld [vmem:[#allocation2 + $0x710] sm:$0xff]
    %v275 = vld [vmem:[#allocation2 + $0x718] sm:$0xff]
    %v276 = vld [vmem:[#allocation2 + $0x720] sm:$0xff]
    %v277 = vld [vmem:[#allocation2 + $0x728] sm:$0xff]
    %v278 = vld [vmem:[#allocation2 + $0x730] sm:$0xff]
    %v279 = vld [vmem:[#allocation2 + $0x738] sm:$0xff]
    %v280 = vld [vmem:[#allocation2 + $0x740] sm:$0xff]
    %v281 = vld [vmem:[#allocation2 + $0x748] sm:$0xff]
    %v282 = vld [vmem:[#allocation2 + $0x750] sm:$0xff]
    %v283 = vld [vmem:[#allocation2 + $0x758] sm:$0xff]
    %v284 = vld [vmem:[#allocation2 + $0x760] sm:$0xff]
    %v285 = vld [vmem:[#allocation2 + $0x768] sm:$0xff]
    %v286 = vld [vmem:[#allocation2 + $0x770] sm:$0xff]
    %v287 = vld [vmem:[#allocation2 + $0x778] sm:$0xff]
    %v288 = vld [vmem:[#allocation2 + $0x780] sm:$0xff]
    %v289 = vld [vmem:[#allocation2 + $0x788] sm:$0xff]
    %v290 = vld [vmem:[#allocation2 + $0x790] sm:$0xff]
    %v291 = vld [vmem:[#allocation2 + $0x798] sm:$0xff]
    %v292 = vld [vmem:[#allocation2 + $0x7a0] sm:$0xff]
    %v293 = vld [vmem:[#allocation2 + $0x7a8] sm:$0xff]
    %v294 = vld [vmem:[#allocation2 + $0x7b0] sm:$0xff]
    %v295 = vld [vmem:[#allocation2 + $0x7b8] sm:$0xff]
    %v296 = vld [vmem:[#allocation2 + $0x7c0] sm:$0xff]
    %v297 = vld [vmem:[#allocation2 + $0x7c8] sm:$0xff]
    %v298 = vld [vmem:[#allocation2 + $0x7d0] sm:$0xff]
    %v299 = vld [vmem:[#allocation2 + $0x7d8] sm:$0xff]
    %v300 = vld [vmem:[#allocation2 + $0x7e0] sm:$0xff]
    %v301 = vld [vmem:[#allocation2 + $0x7e8] sm:$0xff]
    %v302 = vld [vmem:[#allocation2 + $0x7f0] sm:$0xff]
    %v303 = vld [vmem:[#allocation2 + $0x7f8] sm:$0xff]
    %304 = vmatprep.subr.mxu0 %v49
    %305 = vmatpush1.msra.mxu0 %v48
    %306 = vmatprep.subr.mxu0 %v57
    %307 = vmatpush1.msra.mxu0 %v56
    %308 = vmatprep.subr.mxu0 %v65
    %309 = vmatpush1.msra.mxu0 %v64
    %310 = vmatprep.subr.mxu0 %v73
    %311 = vmatpush1.msra.mxu0 %v72
    %312 = vmatprep.subr.mxu0 %v81
    %313 = vmatpush1.msra.mxu0 %v80
    %314 = vmatprep.subr.mxu0 %v89
    %315 = vmatpush1.msra.mxu0 %v88
    %316 = vmatprep.subr.mxu0 %v97
    %317 = vmatpush1.msra.mxu0 %v96
    %318 = vmatprep.subr.mxu0 %v105
    %319 = vmatpush1.msra.mxu0 %v104
    %320 = vmatprep.subr.mxu0 %v113
    %321 = vmatpush1.msra.mxu0 %v112
    %322 = vmatprep.subr.mxu0 %v121
    %323 = vmatpush1.msra.mxu0 %v120
    %324 = vmatprep.subr.mxu0 %v129
    %325 = vmatpush1.msra.mxu0 %v128
    %326 = vmatprep.subr.mxu0 %v137
    %327 = vmatpush1.msra.mxu0 %v136
    %328 = vmatprep.subr.mxu0 %v145
    %329 = vmatpush1.msra.mxu0 %v144
    %330 = vmatprep.subr.mxu0 %v153
    %331 = vmatpush1.msra.mxu0 %v152
    %332 = vmatprep.subr.mxu0 %v161
    %333 = vmatpush1.msra.mxu0 %v160
    %334 = vmatprep.subr.mxu0 %v169
    %335 = vmatpush1.msra.mxu0 %v168
    %336 = vmatprep.subr.mxu0 %v177
    %337 = vmatpush1.msra.mxu0 %v176
    %338 = vmatprep.subr.mxu0 %v185
    %339 = vmatpush1.msra.mxu0 %v184
    %340 = vmatprep.subr.mxu0 %v193
    %341 = vmatpush1.msra.mxu0 %v192
    %342 = vmatprep.subr.mxu0 %v201
    %343 = vmatpush1.msra.mxu0 %v200
    %344 = vmatprep.subr.mxu0 %v209
    %345 = vmatpush1.msra.mxu0 %v208
    %346 = vmatprep.subr.mxu0 %v217
    %347 = vmatpush1.msra.mxu0 %v216
    %348 = vmatprep.subr.mxu0 %v225
    %349 = vmatpush1.msra.mxu0 %v224
    %350 = vmatprep.subr.mxu0 %v233
    %351 = vmatpush1.msra.mxu0 %v232
    %352 = vmatprep.subr.mxu0 %v241
    %353 = vmatpush1.msra.mxu0 %v240
    %354 = vmatprep.subr.mxu0 %v249
    %355 = vmatpush1.msra.mxu0 %v248
    %356 = vmatprep.subr.mxu0 %v257
    %357 = vmatpush1.msra.mxu0 %v256
    %358 = vmatprep.subr.mxu0 %v265
    %359 = vmatpush1.msra.mxu0 %v264
    %360 = vmatprep.subr.mxu0 %v273
    %361 = vmatpush1.msra.mxu0 %v272
    %362 = vmatprep.subr.mxu0 %v281
    %363 = vmatpush1.msra.mxu0 %v280
    %364 = vmatprep.subr.mxu0 %v289
    %365 = vmatpush1.msra.mxu0 %v288
    %366 = vmatprep.subr.mxu0 %v297
    %367 = vmatpush1.msra.mxu0 %v296
    %368 = vmatprep.mubr.f32.mxu0 %v47
    %369 = vmatmul.mubr.f32.gmra.mrb[0].mxu0 %v46
    %v370 = vpop.f32.mrb[0].mxu0
    %v371 = vadd.f32 0.0, %v370
    %v372 = vpop.f32.mrb[0].mxu0
    %v373 = vadd.f32 0.0, %v372
    %374 = vdwg.mxu0
    %375 = vmatprep.subr.mxu0 %v51
    %376 = vmatpush1.msra.mxu0 %v50
    %377 = vmatprep.subr.mxu0 %v59
    %378 = vmatpush1.msra.mxu0 %v58
    %379 = vmatprep.subr.mxu0 %v67
    %380 = vmatpush1.msra.mxu0 %v66
    %381 = vmatprep.subr.mxu0 %v75
    %382 = vmatpush1.msra.mxu0 %v74
    %383 = vmatprep.subr.mxu0 %v83
    %384 = vmatpush1.msra.mxu0 %v82
    %385 = vmatprep.subr.mxu0 %v91
    %386 = vmatpush1.msra.mxu0 %v90
    %387 = vmatprep.subr.mxu0 %v99
    %388 = vmatpush1.msra.mxu0 %v98
    %389 = vmatprep.subr.mxu0 %v107
    %390 = vmatpush1.msra.mxu0 %v106
    %391 = vmatprep.subr.mxu0 %v115
    %392 = vmatpush1.msra.mxu0 %v114
    %393 = vmatprep.subr.mxu0 %v123
    %394 = vmatpush1.msra.mxu0 %v122
    %395 = vmatprep.subr.mxu0 %v131
    %396 = vmatpush1.msra.mxu0 %v130
    %397 = vmatprep.subr.mxu0 %v139
    %398 = vmatpush1.msra.mxu0 %v138
    %399 = vmatprep.subr.mxu0 %v147
    %400 = vmatpush1.msra.mxu0 %v146
    %401 = vmatprep.subr.mxu0 %v155
    %402 = vmatpush1.msra.mxu0 %v154
    %403 = vmatprep.subr.mxu0 %v163
    %404 = vmatpush1.msra.mxu0 %v162
    %405 = vmatprep.subr.mxu0 %v171
    %406 = vmatpush1.msra.mxu0 %v170
    %407 = vmatprep.subr.mxu0 %v179
    %408 = vmatpush1.msra.mxu0 %v178
    %409 = vmatprep.subr.mxu0 %v187
    %410 = vmatpush1.msra.mxu0 %v186
    %411 = vmatprep.subr.mxu0 %v195
    %412 = vmatpush1.msra.mxu0 %v194
    %413 = vmatprep.subr.mxu0 %v203
    %414 = vmatpush1.msra.mxu0 %v202
    %415 = vmatprep.subr.mxu0 %v211
    %416 = vmatpush1.msra.mxu0 %v210
    %417 = vmatprep.subr.mxu0 %v219
    %418 = vmatpush1.msra.mxu0 %v218
    %419 = vmatprep.subr.mxu0 %v227
    %420 = vmatpush1.msra.mxu0 %v226
    %421 = vmatprep.subr.mxu0 %v235
    %422 = vmatpush1.msra.mxu0 %v234
    %423 = vmatprep.subr.mxu0 %v243
    %424 = vmatpush1.msra.mxu0 %v242
    %425 = vmatprep.subr.mxu0 %v251
    %426 = vmatpush1.msra.mxu0 %v250
    %427 = vmatprep.subr.mxu0 %v259
    %428 = vmatpush1.msra.mxu0 %v258
    %429 = vmatprep.subr.mxu0 %v267
    %430 = vmatpush1.msra.mxu0 %v266
    %431 = vmatprep.subr.mxu0 %v275
    %432 = vmatpush1.msra.mxu0 %v274
    %433 = vmatprep.subr.mxu0 %v283
    %434 = vmatpush1.msra.mxu0 %v282
    %435 = vmatprep.subr.mxu0 %v291
    %436 = vmatpush1.msra.mxu0 %v290
    %437 = vmatprep.subr.mxu0 %v299
    %438 = vmatpush1.msra.mxu0 %v298
    %439 = vmatprep.mubr.f32.mxu0 %v47
    %440 = vmatmul.mubr.f32.gmra.mrb[0].mxu0 %v46
    %v441 = vpop.f32.mrb[0].mxu0
    %v442 = vadd.f32 0.0, %v441
    %v443 = vpop.f32.mrb[0].mxu0
    %v444 = vadd.f32 0.0, %v443
    %445 = vdwg.mxu0
    %446 = vmatprep.subr.mxu0 %v53
    %447 = vmatpush1.msra.mxu0 %v52
    %448 = vmatprep.subr.mxu0 %v61
    %449 = vmatpush1.msra.mxu0 %v60
    %450 = vmatprep.subr.mxu0 %v69
    %451 = vmatpush1.msra.mxu0 %v68
    %452 = vmatprep.subr.mxu0 %v77
    %453 = vmatpush1.msra.mxu0 %v76
    %454 = vmatprep.subr.mxu0 %v85
    %455 = vmatpush1.msra.mxu0 %v84
    %456 = vmatprep.subr.mxu0 %v93
    %457 = vmatpush1.msra.mxu0 %v92
    %458 = vmatprep.subr.mxu0 %v101
    %459 = vmatpush1.msra.mxu0 %v100
    %460 = vmatprep.subr.mxu0 %v109
    %461 = vmatpush1.msra.mxu0 %v108
    %462 = vmatprep.subr.mxu0 %v117
    %463 = vmatpush1.msra.mxu0 %v116
    %464 = vmatprep.subr.mxu0 %v125
    %465 = vmatpush1.msra.mxu0 %v124
    %466 = vmatprep.subr.mxu0 %v133
    %467 = vmatpush1.msra.mxu0 %v132
    %468 = vmatprep.subr.mxu0 %v141
    %469 = vmatpush1.msra.mxu0 %v140
    %470 = vmatprep.subr.mxu0 %v149
    %471 = vmatpush1.msra.mxu0 %v148
    %472 = vmatprep.subr.mxu0 %v157
    %473 = vmatpush1.msra.mxu0 %v156
    %474 = vmatprep.subr.mxu0 %v165
    %475 = vmatpush1.msra.mxu0 %v164
    %476 = vmatprep.subr.mxu0 %v173
    %477 = vmatpush1.msra.mxu0 %v172
    %478 = vmatprep.subr.mxu0 %v181
    %479 = vmatpush1.msra.mxu0 %v180
    %480 = vmatprep.subr.mxu0 %v189
    %481 = vmatpush1.msra.mxu0 %v188
    %482 = vmatprep.subr.mxu0 %v197
    %483 = vmatpush1.msra.mxu0 %v196
    %484 = vmatprep.subr.mxu0 %v205
    %485 = vmatpush1.msra.mxu0 %v204
    %486 = vmatprep.subr.mxu0 %v213
    %487 = vmatpush1.msra.mxu0 %v212
    %488 = vmatprep.subr.mxu0 %v221
    %489 = vmatpush1.msra.mxu0 %v220
    %490 = vmatprep.subr.mxu0 %v229
    %491 = vmatpush1.msra.mxu0 %v228
    %492 = vmatprep.subr.mxu0 %v237
    %493 = vmatpush1.msra.mxu0 %v236
    %494 = vmatprep.subr.mxu0 %v245
    %495 = vmatpush1.msra.mxu0 %v244
    %496 = vmatprep.subr.mxu0 %v253
    %497 = vmatpush1.msra.mxu0 %v252
    %498 = vmatprep.subr.mxu0 %v261
    %499 = vmatpush1.msra.mxu0 %v260
    %500 = vmatprep.subr.mxu0 %v269
    %501 = vmatpush1.msra.mxu0 %v268
    %502 = vmatprep.subr.mxu0 %v277
    %503 = vmatpush1.msra.mxu0 %v276
    %504 = vmatprep.subr.mxu0 %v285
    %505 = vmatpush1.msra.mxu0 %v284
    %506 = vmatprep.subr.mxu0 %v293
    %507 = vmatpush1.msra.mxu0 %v292
    %508 = vmatprep.subr.mxu0 %v301
    %509 = vmatpush1.msra.mxu0 %v300
    %510 = vmatprep.mubr.f32.mxu0 %v47
    %511 = vmatmul.mubr.f32.gmra.mrb[0].mxu0 %v46
    %v512 = vpop.f32.mrb[0].mxu0
    %v513 = vadd.f32 0.0, %v512
    %v514 = vpop.f32.mrb[0].mxu0
    %v515 = vadd.f32 0.0, %v514
    %516 = vdwg.mxu0
    %517 = vmatprep.subr.mxu0 %v55
    %518 = vmatpush1.msra.mxu0 %v54
    %519 = vmatprep.subr.mxu0 %v63
    %520 = vmatpush1.msra.mxu0 %v62
    %521 = vmatprep.subr.mxu0 %v71
    %522 = vmatpush1.msra.mxu0 %v70
    %523 = vmatprep.subr.mxu0 %v79
    %524 = vmatpush1.msra.mxu0 %v78
    %525 = vmatprep.subr.mxu0 %v87
    %526 = vmatpush1.msra.mxu0 %v86
    %527 = vmatprep.subr.mxu0 %v95
    %528 = vmatpush1.msra.mxu0 %v94
    %529 = vmatprep.subr.mxu0 %v103
    %530 = vmatpush1.msra.mxu0 %v102
    %531 = vmatprep.subr.mxu0 %v111
    %532 = vmatpush1.msra.mxu0 %v110
    %533 = vmatprep.subr.mxu0 %v119
    %534 = vmatpush1.msra.mxu0 %v118
    %535 = vmatprep.subr.mxu0 %v127
    %536 = vmatpush1.msra.mxu0 %v126
    %537 = vmatprep.subr.mxu0 %v135
    %538 = vmatpush1.msra.mxu0 %v134
    %539 = vmatprep.subr.mxu0 %v143
    %540 = vmatpush1.msra.mxu0 %v142
    %541 = vmatprep.subr.mxu0 %v151
    %542 = vmatpush1.msra.mxu0 %v150
    %543 = vmatprep.subr.mxu0 %v159
    %544 = vmatpush1.msra.mxu0 %v158
    %545 = vmatprep.subr.mxu0 %v167
    %546 = vmatpush1.msra.mxu0 %v166
    %547 = vmatprep.subr.mxu0 %v175
    %548 = vmatpush1.msra.mxu0 %v174
    %549 = vmatprep.subr.mxu0 %v183
    %550 = vmatpush1.msra.mxu0 %v182
    %551 = vmatprep.subr.mxu0 %v191
    %552 = vmatpush1.msra.mxu0 %v190
    %553 = vmatprep.subr.mxu0 %v199
    %554 = vmatpush1.msra.mxu0 %v198
    %555 = vmatprep.subr.mxu0 %v207
    %556 = vmatpush1.msra.mxu0 %v206
    %557 = vmatprep.subr.mxu0 %v215
    %558 = vmatpush1.msra.mxu0 %v214
    %559 = vmatprep.subr.mxu0 %v223
    %560 = vmatpush1.msra.mxu0 %v222
    %561 = vmatprep.subr.mxu0 %v231
    %562 = vmatpush1.msra.mxu0 %v230
    %563 = vmatprep.subr.mxu0 %v239
    %564 = vmatpush1.msra.mxu0 %v238
    %565 = vmatprep.subr.mxu0 %v247
    %566 = vmatpush1.msra.mxu0 %v246
    %567 = vmatprep.subr.mxu0 %v255
    %568 = vmatpush1.msra.mxu0 %v254
    %569 = vmatprep.subr.mxu0 %v263
    %570 = vmatpush1.msra.mxu0 %v262
    %571 = vmatprep.subr.mxu0 %v271
    %572 = vmatpush1.msra.mxu0 %v270
    %573 = vmatprep.subr.mxu0 %v279
    %574 = vmatpush1.msra.mxu0 %v278
    %575 = vmatprep.subr.mxu0 %v287
    %576 = vmatpush1.msra.mxu0 %v286
    %577 = vmatprep.subr.mxu0 %v295
    %578 = vmatpush1.msra.mxu0 %v294
    %579 = vmatprep.subr.mxu0 %v303
    %580 = vmatpush1.msra.mxu0 %v302
    %581 = vmatprep.mubr.f32.mxu0 %v47
    %582 = vmatmul.mubr.f32.gmra.mrb[0].mxu0 %v46
    %v583 = vpop.f32.mrb[0].mxu0
    %v584 = vadd.f32 0.0, %v583
    %v585 = vpop.f32.mrb[0].mxu0
    %v586 = vadd.f32 0.0, %v585
    %587 = vdwg.mxu0
    %v588 = vld [vmem:[%s2] sm:$0xff]
    %vm589 = vcmask 64512
    %v591 = vsel %vm589, %v588, 0
    %593 = vmatprep.subr.mxu0 %v373
    %594 = vmatpush1.msra.mxu0 %v371
    %595 = vmatprep.subr.mxu0 0.0
    %596 = vmatpush1.msra.mxu0 0.0
    %597 = vmatprep.subr.mxu0 0.0
    %598 = vmatpush1.msra.mxu0 0.0
    %599 = vmatprep.subr.mxu0 0.0
    %600 = vmatpush1.msra.mxu0 0.0
    %601 = vmatprep.subr.mxu0 0.0
    %602 = vmatpush1.msra.mxu0 0.0
    %603 = vmatprep.subr.mxu0 0.0
    %604 = vmatpush1.msra.mxu0 0.0
    %605 = vmatprep.subr.mxu0 0.0
    %606 = vmatpush1.msra.mxu0 0.0
    %607 = vmatprep.subr.mxu0 0.0
    %608 = vmatpush1.msra.mxu0 0.0
    %609 = vmatprep.subr.mxu0 0.0
    %610 = vmatpush1.msra.mxu0 0.0
    %611 = vmatprep.subr.mxu0 0.0
    %612 = vmatpush1.msra.mxu0 0.0
    %613 = vmatprep.subr.mxu0 0.0
    %614 = vmatpush1.msra.mxu0 0.0
    %615 = vmatprep.subr.mxu0 0.0
    %616 = vmatpush1.msra.mxu0 0.0
    %617 = vmatprep.subr.mxu0 0.0
    %618 = vmatpush1.msra.mxu0 0.0
    %619 = vmatprep.subr.mxu0 0.0
    %620 = vmatpush1.msra.mxu0 0.0
    %621 = vmatprep.subr.mxu0 0.0
    %622 = vmatpush1.msra.mxu0 0.0
    %623 = vmatprep.subr.mxu0 0.0
    %624 = vmatpush1.msra.mxu0 0.0
    %625 = vmatprep.subr.mxu0 0.0
    %626 = vmatpush1.msra.mxu0 0.0
    %627 = vmatprep.subr.mxu0 0.0
    %628 = vmatpush1.msra.mxu0 0.0
    %629 = vmatprep.subr.mxu0 0.0
    %630 = vmatpush1.msra.mxu0 0.0
    %631 = vmatprep.subr.mxu0 0.0
    %632 = vmatpush1.msra.mxu0 0.0
    %633 = vmatprep.subr.mxu0 0.0
    %634 = vmatpush1.msra.mxu0 0.0
    %635 = vmatprep.subr.mxu0 0.0
    %636 = vmatpush1.msra.mxu0 0.0
    %637 = vmatprep.subr.mxu0 0.0
    %638 = vmatpush1.msra.mxu0 0.0
    %639 = vmatprep.subr.mxu0 0.0
    %640 = vmatpush1.msra.mxu0 0.0
    %641 = vmatprep.subr.mxu0 0.0
    %642 = vmatpush1.msra.mxu0 0.0
    %643 = vmatprep.subr.mxu0 0.0
    %644 = vmatpush1.msra.mxu0 0.0
    %645 = vmatprep.subr.mxu0 0.0
    %646 = vmatpush1.msra.mxu0 0.0
    %647 = vmatprep.subr.mxu0 0.0
    %648 = vmatpush1.msra.mxu0 0.0
    %649 = vmatprep.subr.mxu0 0.0
    %650 = vmatpush1.msra.mxu0 0.0
    %651 = vmatprep.subr.mxu0 0.0
    %652 = vmatpush1.msra.mxu0 0.0
    %653 = vmatprep.subr.mxu0 0.0
    %654 = vmatpush1.msra.mxu0 0.0
    %655 = vmatprep.subr.mxu0 0.0
    %656 = vmatpush1.msra.mxu0 0.0
    %657 = vmatprep.mubr.f32.mxu0 0.0
    %658 = vmatmul.mubr.f32.gmra.mrb[0].mxu0 %v591
    %v659 = vpop.f32.mrb[0].mxu0
    %v660 = vadd.f32 0.0, %v659
    %v661 = vpop.f32.mrb[0].mxu0
    %v662 = vadd.f32 0.0, %v661
    %663 = vdwg.mxu0
    %664 = vmatprep.subr.mxu0 %v444
    %665 = vmatpush1.msra.mxu0 %v442
    %666 = vmatprep.subr.mxu0 0.0
    %667 = vmatpush1.msra.mxu0 0.0
    %668 = vmatprep.subr.mxu0 0.0
    %669 = vmatpush1.msra.mxu0 0.0
    %670 = vmatprep.subr.mxu0 0.0
    %671 = vmatpush1.msra.mxu0 0.0
    %672 = vmatprep.subr.mxu0 0.0
    %673 = vmatpush1.msra.mxu0 0.0
    %674 = vmatprep.subr.mxu0 0.0
    %675 = vmatpush1.msra.mxu0 0.0
    %676 = vmatprep.subr.mxu0 0.0
    %677 = vmatpush1.msra.mxu0 0.0
    %678 = vmatprep.subr.mxu0 0.0
    %679 = vmatpush1.msra.mxu0 0.0
    %680 = vmatprep.subr.mxu0 0.0
    %681 = vmatpush1.msra.mxu0 0.0
    %682 = vmatprep.subr.mxu0 0.0
    %683 = vmatpush1.msra.mxu0 0.0
    %684 = vmatprep.subr.mxu0 0.0
    %685 = vmatpush1.msra.mxu0 0.0
    %686 = vmatprep.subr.mxu0 0.0
    %687 = vmatpush1.msra.mxu0 0.0
    %688 = vmatprep.subr.mxu0 0.0
    %689 = vmatpush1.msra.mxu0 0.0
    %690 = vmatprep.subr.mxu0 0.0
    %691 = vmatpush1.msra.mxu0 0.0
    %692 = vmatprep.subr.mxu0 0.0
    %693 = vmatpush1.msra.mxu0 0.0
    %694 = vmatprep.subr.mxu0 0.0
    %695 = vmatpush1.msra.mxu0 0.0
    %696 = vmatprep.subr.mxu0 0.0
    %697 = vmatpush1.msra.mxu0 0.0
    %698 = vmatprep.subr.mxu0 0.0
    %699 = vmatpush1.msra.mxu0 0.0
    %700 = vmatprep.subr.mxu0 0.0
    %701 = vmatpush1.msra.mxu0 0.0
    %702 = vmatprep.subr.mxu0 0.0
    %703 = vmatpush1.msra.mxu0 0.0
    %704 = vmatprep.subr.mxu0 0.0
    %705 = vmatpush1.msra.mxu0 0.0
    %706 = vmatprep.subr.mxu0 0.0
    %707 = vmatpush1.msra.mxu0 0.0
    %708 = vmatprep.subr.mxu0 0.0
    %709 = vmatpush1.msra.mxu0 0.0
    %710 = vmatprep.subr.mxu0 0.0
    %711 = vmatpush1.msra.mxu0 0.0
    %712 = vmatprep.subr.mxu0 0.0
    %713 = vmatpush1.msra.mxu0 0.0
    %714 = vmatprep.subr.mxu0 0.0
    %715 = vmatpush1.msra.mxu0 0.0
    %716 = vmatprep.subr.mxu0 0.0
    %717 = vmatpush1.msra.mxu0 0.0
    %718 = vmatprep.subr.mxu0 0.0
    %719 = vmatpush1.msra.mxu0 0.0
    %720 = vmatprep.subr.mxu0 0.0
    %721 = vmatpush1.msra.mxu0 0.0
    %722 = vmatprep.subr.mxu0 0.0
    %723 = vmatpush1.msra.mxu0 0.0
    %724 = vmatprep.subr.mxu0 0.0
    %725 = vmatpush1.msra.mxu0 0.0
    %726 = vmatprep.subr.mxu0 0.0
    %727 = vmatpush1.msra.mxu0 0.0
    %728 = vmatprep.mubr.f32.mxu0 0.0
    %729 = vmatmul.mubr.f32.gmra.mrb[0].mxu0 %v591
    %v730 = vpop.f32.mrb[0].mxu0
    %v731 = vadd.f32 0.0, %v730
    %v732 = vpop.f32.mrb[0].mxu0
    %v733 = vadd.f32 0.0, %v732
    %734 = vdwg.mxu0
    %735 = vmatprep.subr.mxu0 %v515
    %736 = vmatpush1.msra.mxu0 %v513
    %737 = vmatprep.subr.mxu0 0.0
    %738 = vmatpush1.msra.mxu0 0.0
    %739 = vmatprep.subr.mxu0 0.0
    %740 = vmatpush1.msra.mxu0 0.0
    %741 = vmatprep.subr.mxu0 0.0
    %742 = vmatpush1.msra.mxu0 0.0
    %743 = vmatprep.subr.mxu0 0.0
    %744 = vmatpush1.msra.mxu0 0.0
    %745 = vmatprep.subr.mxu0 0.0
    %746 = vmatpush1.msra.mxu0 0.0
    %747 = vmatprep.subr.mxu0 0.0
    %748 = vmatpush1.msra.mxu0 0.0
    %749 = vmatprep.subr.mxu0 0.0
    %750 = vmatpush1.msra.mxu0 0.0
    %751 = vmatprep.subr.mxu0 0.0
    %752 = vmatpush1.msra.mxu0 0.0
    %753 = vmatprep.subr.mxu0 0.0
    %754 = vmatpush1.msra.mxu0 0.0
    %755 = vmatprep.subr.mxu0 0.0
    %756 = vmatpush1.msra.mxu0 0.0
    %757 = vmatprep.subr.mxu0 0.0
    %758 = vmatpush1.msra.mxu0 0.0
    %759 = vmatprep.subr.mxu0 0.0
    %760 = vmatpush1.msra.mxu0 0.0
    %761 = vmatprep.subr.mxu0 0.0
    %762 = vmatpush1.msra.mxu0 0.0
    %763 = vmatprep.subr.mxu0 0.0
    %764 = vmatpush1.msra.mxu0 0.0
    %765 = vmatprep.subr.mxu0 0.0
    %766 = vmatpush1.msra.mxu0 0.0
    %767 = vmatprep.subr.mxu0 0.0
    %768 = vmatpush1.msra.mxu0 0.0
    %769 = vmatprep.subr.mxu0 0.0
    %770 = vmatpush1.msra.mxu0 0.0
    %771 = vmatprep.subr.mxu0 0.0
    %772 = vmatpush1.msra.mxu0 0.0
    %773 = vmatprep.subr.mxu0 0.0
    %774 = vmatpush1.msra.mxu0 0.0
    %775 = vmatprep.subr.mxu0 0.0
    %776 = vmatpush1.msra.mxu0 0.0
    %777 = vmatprep.subr.mxu0 0.0
    %778 = vmatpush1.msra.mxu0 0.0
    %779 = vmatprep.subr.mxu0 0.0
    %780 = vmatpush1.msra.mxu0 0.0
    %781 = vmatprep.subr.mxu0 0.0
    %782 = vmatpush1.msra.mxu0 0.0
    %783 = vmatprep.subr.mxu0 0.0
    %784 = vmatpush1.msra.mxu0 0.0
    %785 = vmatprep.subr.mxu0 0.0
    %786 = vmatpush1.msra.mxu0 0.0
    %787 = vmatprep.subr.mxu0 0.0
    %788 = vmatpush1.msra.mxu0 0.0
    %789 = vmatprep.subr.mxu0 0.0
    %790 = vmatpush1.msra.mxu0 0.0
    %791 = vmatprep.subr.mxu0 0.0
    %792 = vmatpush1.msra.mxu0 0.0
    %793 = vmatprep.subr.mxu0 0.0
    %794 = vmatpush1.msra.mxu0 0.0
    %795 = vmatprep.subr.mxu0 0.0
    %796 = vmatpush1.msra.mxu0 0.0
    %797 = vmatprep.subr.mxu0 0.0
    %798 = vmatpush1.msra.mxu0 0.0
    %799 = vmatprep.mubr.f32.mxu0 0.0
    %800 = vmatmul.mubr.f32.gmra.mrb[0].mxu0 %v591
    %v801 = vpop.f32.mrb[0].mxu0
    %v802 = vadd.f32 0.0, %v801
    %v803 = vpop.f32.mrb[0].mxu0
    %v804 = vadd.f32 0.0, %v803
    %805 = vdwg.mxu0
    %806 = vmatprep.subr.mxu0 %v586
    %807 = vmatpush1.msra.mxu0 %v584
    %808 = vmatprep.subr.mxu0 0.0
    %809 = vmatpush1.msra.mxu0 0.0
    %810 = vmatprep.subr.mxu0 0.0
    %811 = vmatpush1.msra.mxu0 0.0
    %812 = vmatprep.subr.mxu0 0.0
    %813 = vmatpush1.msra.mxu0 0.0
    %814 = vmatprep.subr.mxu0 0.0
    %815 = vmatpush1.msra.mxu0 0.0
    %816 = vmatprep.subr.mxu0 0.0
    %817 = vmatpush1.msra.mxu0 0.0
    %818 = vmatprep.subr.mxu0 0.0
    %819 = vmatpush1.msra.mxu0 0.0
    %820 = vmatprep.subr.mxu0 0.0
    %821 = vmatpush1.msra.mxu0 0.0
    %822 = vmatprep.subr.mxu0 0.0
    %823 = vmatpush1.msra.mxu0 0.0
    %824 = vmatprep.subr.mxu0 0.0
    %825 = vmatpush1.msra.mxu0 0.0
    %826 = vmatprep.subr.mxu0 0.0
    %827 = vmatpush1.msra.mxu0 0.0
    %828 = vmatprep.subr.mxu0 0.0
    %829 = vmatpush1.msra.mxu0 0.0
    %830 = vmatprep.subr.mxu0 0.0
    %831 = vmatpush1.msra.mxu0 0.0
    %832 = vmatprep.subr.mxu0 0.0
    %833 = vmatpush1.msra.mxu0 0.0
    %834 = vmatprep.subr.mxu0 0.0
    %835 = vmatpush1.msra.mxu0 0.0
    %836 = vmatprep.subr.mxu0 0.0
    %837 = vmatpush1.msra.mxu0 0.0
    %838 = vmatprep.subr.mxu0 0.0
    %839 = vmatpush1.msra.mxu0 0.0
    %840 = vmatprep.subr.mxu0 0.0
    %841 = vmatpush1.msra.mxu0 0.0
    %842 = vmatprep.subr.mxu0 0.0
    %843 = vmatpush1.msra.mxu0 0.0
    %844 = vmatprep.subr.mxu0 0.0
    %845 = vmatpush1.msra.mxu0 0.0
    %846 = vmatprep.subr.mxu0 0.0
    %847 = vmatpush1.msra.mxu0 0.0
    %848 = vmatprep.subr.mxu0 0.0
    %849 = vmatpush1.msra.mxu0 0.0
    %850 = vmatprep.subr.mxu0 0.0
    %851 = vmatpush1.msra.mxu0 0.0
    %852 = vmatprep.subr.mxu0 0.0
    %853 = vmatpush1.msra.mxu0 0.0
    %854 = vmatprep.subr.mxu0 0.0
    %855 = vmatpush1.msra.mxu0 0.0
    %856 = vmatprep.subr.mxu0 0.0
    %857 = vmatpush1.msra.mxu0 0.0
    %858 = vmatprep.subr.mxu0 0.0
    %859 = vmatpush1.msra.mxu0 0.0
    %860 = vmatprep.subr.mxu0 0.0
    %861 = vmatpush1.msra.mxu0 0.0
    %862 = vmatprep.subr.mxu0 0.0
    %863 = vmatpush1.msra.mxu0 0.0
    %864 = vmatprep.subr.mxu0 0.0
    %865 = vmatpush1.msra.mxu0 0.0
    %866 = vmatprep.subr.mxu0 0.0
    %867 = vmatpush1.msra.mxu0 0.0
    %868 = vmatprep.subr.mxu0 0.0
    %869 = vmatpush1.msra.mxu0 0.0
    %870 = vmatprep.mubr.f32.mxu0 0.0
    %871 = vmatmul.mubr.f32.gmra.mrb[0].mxu0 %v591
    %v872 = vpop.f32.mrb[0].mxu0
    %v873 = vadd.f32 0.0, %v872
    %v874 = vpop.f32.mrb[0].mxu0
    %v875 = vadd.f32 0.0, %v874
    %876 = vdwg.mxu0
    %v877 = vmul.f32 %v371, %v371
    %v878 = vmul.f32 %v373, %v373
    %v879 = vmul.f32 %v442, %v442
    %v880 = vmul.f32 %v444, %v444
    %v881 = vmul.f32 %v513, %v513
    %v882 = vmul.f32 %v515, %v515
    %v883 = vmul.f32 %v584, %v584
    %v884 = vmul.f32 %v586, %v586
    %885 = vmatprep.subr.mxu0 %v878
    %886 = vmatpush1.msra.mxu0 %v877
    %887 = vmatprep.subr.mxu0 0.0
    %888 = vmatpush1.msra.mxu0 0.0
    %889 = vmatprep.subr.mxu0 0.0
    %890 = vmatpush1.msra.mxu0 0.0
    %891 = vmatprep.subr.mxu0 0.0
    %892 = vmatpush1.msra.mxu0 0.0
    %893 = vmatprep.subr.mxu0 0.0
    %894 = vmatpush1.msra.mxu0 0.0
    %895 = vmatprep.subr.mxu0 0.0
    %896 = vmatpush1.msra.mxu0 0.0
    %897 = vmatprep.subr.mxu0 0.0
    %898 = vmatpush1.msra.mxu0 0.0
    %899 = vmatprep.subr.mxu0 0.0
    %900 = vmatpush1.msra.mxu0 0.0
    %901 = vmatprep.subr.mxu0 0.0
    %902 = vmatpush1.msra.mxu0 0.0
    %903 = vmatprep.subr.mxu0 0.0
    %904 = vmatpush1.msra.mxu0 0.0
    %905 = vmatprep.subr.mxu0 0.0
    %906 = vmatpush1.msra.mxu0 0.0
    %907 = vmatprep.subr.mxu0 0.0
    %908 = vmatpush1.msra.mxu0 0.0
    %909 = vmatprep.subr.mxu0 0.0
    %910 = vmatpush1.msra.mxu0 0.0
    %911 = vmatprep.subr.mxu0 0.0
    %912 = vmatpush1.msra.mxu0 0.0
    %913 = vmatprep.subr.mxu0 0.0
    %914 = vmatpush1.msra.mxu0 0.0
    %915 = vmatprep.subr.mxu0 0.0
    %916 = vmatpush1.msra.mxu0 0.0
    %917 = vmatprep.subr.mxu0 0.0
    %918 = vmatpush1.msra.mxu0 0.0
    %919 = vmatprep.subr.mxu0 0.0
    %920 = vmatpush1.msra.mxu0 0.0
    %921 = vmatprep.subr.mxu0 0.0
    %922 = vmatpush1.msra.mxu0 0.0
    %923 = vmatprep.subr.mxu0 0.0
    %924 = vmatpush1.msra.mxu0 0.0
    %925 = vmatprep.subr.mxu0 0.0
    %926 = vmatpush1.msra.mxu0 0.0
    %927 = vmatprep.subr.mxu0 0.0
    %928 = vmatpush1.msra.mxu0 0.0
    %929 = vmatprep.subr.mxu0 0.0
    %930 = vmatpush1.msra.mxu0 0.0
    %931 = vmatprep.subr.mxu0 0.0
    %932 = vmatpush1.msra.mxu0 0.0
    %933 = vmatprep.subr.mxu0 0.0
    %934 = vmatpush1.msra.mxu0 0.0
    %935 = vmatprep.subr.mxu0 0.0
    %936 = vmatpush1.msra.mxu0 0.0
    %937 = vmatprep.subr.mxu0 0.0
    %938 = vmatpush1.msra.mxu0 0.0
    %939 = vmatprep.subr.mxu0 0.0
    %940 = vmatpush1.msra.mxu0 0.0
    %941 = vmatprep.subr.mxu0 0.0
    %942 = vmatpush1.msra.mxu0 0.0
    %943 = vmatprep.subr.mxu0 0.0
    %944 = vmatpush1.msra.mxu0 0.0
    %945 = vmatprep.subr.mxu0 0.0
    %946 = vmatpush1.msra.mxu0 0.0
    %947 = vmatprep.subr.mxu0 0.0
    %948 = vmatpush1.msra.mxu0 0.0
    %949 = vmatprep.mubr.f32.mxu0 0.0
    %950 = vmatmul.mubr.f32.gmra.mrb[0].mxu0 %v591
    %v951 = vpop.f32.mrb[0].mxu0
    %v952 = vadd.f32 0.0, %v951
    %v953 = vpop.f32.mrb[0].mxu0
    %v954 = vadd.f32 0.0, %v953
    %955 = vdwg.mxu0
    %956 = vmatprep.subr.mxu0 %v880
    %957 = vmatpush1.msra.mxu0 %v879
    %958 = vmatprep.subr.mxu0 0.0
    %959 = vmatpush1.msra.mxu0 0.0
    %960 = vmatprep.subr.mxu0 0.0
    %961 = vmatpush1.msra.mxu0 0.0
    %962 = vmatprep.subr.mxu0 0.0
    %963 = vmatpush1.msra.mxu0 0.0
    %964 = vmatprep.subr.mxu0 0.0
    %965 = vmatpush1.msra.mxu0 0.0
    %966 = vmatprep.subr.mxu0 0.0
    %967 = vmatpush1.msra.mxu0 0.0
    %968 = vmatprep.subr.mxu0 0.0
    %969 = vmatpush1.msra.mxu0 0.0
    %970 = vmatprep.subr.mxu0 0.0
    %971 = vmatpush1.msra.mxu0 0.0
    %972 = vmatprep.subr.mxu0 0.0
    %973 = vmatpush1.msra.mxu0 0.0
    %974 = vmatprep.subr.mxu0 0.0
    %975 = vmatpush1.msra.mxu0 0.0
    %976 = vmatprep.subr.mxu0 0.0
    %977 = vmatpush1.msra.mxu0 0.0
    %978 = vmatprep.subr.mxu0 0.0
    %979 = vmatpush1.msra.mxu0 0.0
    %980 = vmatprep.subr.mxu0 0.0
    %981 = vmatpush1.msra.mxu0 0.0
    %982 = vmatprep.subr.mxu0 0.0
    %983 = vmatpush1.msra.mxu0 0.0
    %984 = vmatprep.subr.mxu0 0.0
    %985 = vmatpush1.msra.mxu0 0.0
    %986 = vmatprep.subr.mxu0 0.0
    %987 = vmatpush1.msra.mxu0 0.0
    %988 = vmatprep.subr.mxu0 0.0
    %989 = vmatpush1.msra.mxu0 0.0
    %990 = vmatprep.subr.mxu0 0.0
    %991 = vmatpush1.msra.mxu0 0.0
    %992 = vmatprep.subr.mxu0 0.0
    %993 = vmatpush1.msra.mxu0 0.0
    %994 = vmatprep.subr.mxu0 0.0
    %995 = vmatpush1.msra.mxu0 0.0
    %996 = vmatprep.subr.mxu0 0.0
    %997 = vmatpush1.msra.mxu0 0.0
    %998 = vmatprep.subr.mxu0 0.0
    %999 = vmatpush1.msra.mxu0 0.0
    %1000 = vmatprep.subr.mxu0 0.0
    %1001 = vmatpush1.msra.mxu0 0.0
    %1002 = vmatprep.subr.mxu0 0.0
    %1003 = vmatpush1.msra.mxu0 0.0
    %1004 = vmatprep.subr.mxu0 0.0
    %1005 = vmatpush1.msra.mxu0 0.0
    %1006 = vmatprep.subr.mxu0 0.0
    %1007 = vmatpush1.msra.mxu0 0.0
    %1008 = vmatprep.subr.mxu0 0.0
    %1009 = vmatpush1.msra.mxu0 0.0
    %1010 = vmatprep.subr.mxu0 0.0
    %1011 = vmatpush1.msra.mxu0 0.0
    %1012 = vmatprep.subr.mxu0 0.0
    %1013 = vmatpush1.msra.mxu0 0.0
    %1014 = vmatprep.subr.mxu0 0.0
    %1015 = vmatpush1.msra.mxu0 0.0
    %1016 = vmatprep.subr.mxu0 0.0
    %1017 = vmatpush1.msra.mxu0 0.0
    %1018 = vmatprep.subr.mxu0 0.0
    %1019 = vmatpush1.msra.mxu0 0.0
    %1020 = vmatprep.mubr.f32.mxu0 0.0
    %1021 = vmatmul.mubr.f32.gmra.mrb[0].mxu0 %v591
    %v1022 = vpop.f32.mrb[0].mxu0
    %v1023 = vadd.f32 0.0, %v1022
    %v1024 = vpop.f32.mrb[0].mxu0
    %v1025 = vadd.f32 0.0, %v1024
    %1026 = vdwg.mxu0
    %1027 = vmatprep.subr.mxu0 %v882
    %1028 = vmatpush1.msra.mxu0 %v881
    %1029 = vmatprep.subr.mxu0 0.0
    %1030 = vmatpush1.msra.mxu0 0.0
    %1031 = vmatprep.subr.mxu0 0.0
    %1032 = vmatpush1.msra.mxu0 0.0
    %1033 = vmatprep.subr.mxu0 0.0
    %1034 = vmatpush1.msra.mxu0 0.0
    %1035 = vmatprep.subr.mxu0 0.0
    %1036 = vmatpush1.msra.mxu0 0.0
    %1037 = vmatprep.subr.mxu0 0.0
    %1038 = vmatpush1.msra.mxu0 0.0
    %1039 = vmatprep.subr.mxu0 0.0
    %1040 = vmatpush1.msra.mxu0 0.0
    %1041 = vmatprep.subr.mxu0 0.0
    %1042 = vmatpush1.msra.mxu0 0.0
    %1043 = vmatprep.subr.mxu0 0.0
    %1044 = vmatpush1.msra.mxu0 0.0
    %1045 = vmatprep.subr.mxu0 0.0
    %1046 = vmatpush1.msra.mxu0 0.0
    %1047 = vmatprep.subr.mxu0 0.0
    %1048 = vmatpush1.msra.mxu0 0.0
    %1049 = vmatprep.subr.mxu0 0.0
    %1050 = vmatpush1.msra.mxu0 0.0
    %1051 = vmatprep.subr.mxu0 0.0
    %1052 = vmatpush1.msra.mxu0 0.0
    %1053 = vmatprep.subr.mxu0 0.0
    %1054 = vmatpush1.msra.mxu0 0.0
    %1055 = vmatprep.subr.mxu0 0.0
    %1056 = vmatpush1.msra.mxu0 0.0
    %1057 = vmatprep.subr.mxu0 0.0
    %1058 = vmatpush1.msra.mxu0 0.0
    %1059 = vmatprep.subr.mxu0 0.0
    %1060 = vmatpush1.msra.mxu0 0.0
    %1061 = vmatprep.subr.mxu0 0.0
    %1062 = vmatpush1.msra.mxu0 0.0
    %1063 = vmatprep.subr.mxu0 0.0
    %1064 = vmatpush1.msra.mxu0 0.0
    %1065 = vmatprep.subr.mxu0 0.0
    %1066 = vmatpush1.msra.mxu0 0.0
    %1067 = vmatprep.subr.mxu0 0.0
    %1068 = vmatpush1.msra.mxu0 0.0
    %1069 = vmatprep.subr.mxu0 0.0
    %1070 = vmatpush1.msra.mxu0 0.0
    %1071 = vmatprep.subr.mxu0 0.0
    %1072 = vmatpush1.msra.mxu0 0.0
    %1073 = vmatprep.subr.mxu0 0.0
    %1074 = vmatpush1.msra.mxu0 0.0
    %1075 = vmatprep.subr.mxu0 0.0
    %1076 = vmatpush1.msra.mxu0 0.0
    %1077 = vmatprep.subr.mxu0 0.0
    %1078 = vmatpush1.msra.mxu0 0.0
    %1079 = vmatprep.subr.mxu0 0.0
    %1080 = vmatpush1.msra.mxu0 0.0
    %1081 = vmatprep.subr.mxu0 0.0
    %1082 = vmatpush1.msra.mxu0 0.0
    %1083 = vmatprep.subr.mxu0 0.0
    %1084 = vmatpush1.msra.mxu0 0.0
    %1085 = vmatprep.subr.mxu0 0.0
    %1086 = vmatpush1.msra.mxu0 0.0
    %1087 = vmatprep.subr.mxu0 0.0
    %1088 = vmatpush1.msra.mxu0 0.0
    %1089 = vmatprep.subr.mxu0 0.0
    %1090 = vmatpush1.msra.mxu0 0.0
    %1091 = vmatprep.mubr.f32.mxu0 0.0
    %1092 = vmatmul.mubr.f32.gmra.mrb[0].mxu0 %v591
    %v1093 = vpop.f32.mrb[0].mxu0
    %v1094 = vadd.f32 0.0, %v1093
    %v1095 = vpop.f32.mrb[0].mxu0
    %v1096 = vadd.f32 0.0, %v1095
    %1097 = vdwg.mxu0
    %1098 = vmatprep.subr.mxu0 %v884
    %1099 = vmatpush1.msra.mxu0 %v883
    %1100 = vmatprep.subr.mxu0 0.0
    %1101 = vmatpush1.msra.mxu0 0.0
    %1102 = vmatprep.subr.mxu0 0.0
    %1103 = vmatpush1.msra.mxu0 0.0
    %1104 = vmatprep.subr.mxu0 0.0
    %1105 = vmatpush1.msra.mxu0 0.0
    %1106 = vmatprep.subr.mxu0 0.0
    %1107 = vmatpush1.msra.mxu0 0.0
    %1108 = vmatprep.subr.mxu0 0.0
    %1109 = vmatpush1.msra.mxu0 0.0
    %1110 = vmatprep.subr.mxu0 0.0
    %1111 = vmatpush1.msra.mxu0 0.0
    %1112 = vmatprep.subr.mxu0 0.0
    %1113 = vmatpush1.msra.mxu0 0.0
    %1114 = vmatprep.subr.mxu0 0.0
    %1115 = vmatpush1.msra.mxu0 0.0
    %1116 = vmatprep.subr.mxu0 0.0
    %1117 = vmatpush1.msra.mxu0 0.0
    %1118 = vmatprep.subr.mxu0 0.0
    %1119 = vmatpush1.msra.mxu0 0.0
    %1120 = vmatprep.subr.mxu0 0.0
    %1121 = vmatpush1.msra.mxu0 0.0
    %1122 = vmatprep.subr.mxu0 0.0
    %1123 = vmatpush1.msra.mxu0 0.0
    %1124 = vmatprep.subr.mxu0 0.0
    %1125 = vmatpush1.msra.mxu0 0.0
    %1126 = vmatprep.subr.mxu0 0.0
    %1127 = vmatpush1.msra.mxu0 0.0
    %1128 = vmatprep.subr.mxu0 0.0
    %1129 = vmatpush1.msra.mxu0 0.0
    %1130 = vmatprep.subr.mxu0 0.0
    %1131 = vmatpush1.msra.mxu0 0.0
    %1132 = vmatprep.subr.mxu0 0.0
    %1133 = vmatpush1.msra.mxu0 0.0
    %1134 = vmatprep.subr.mxu0 0.0
    %1135 = vmatpush1.msra.mxu0 0.0
    %1136 = vmatprep.subr.mxu0 0.0
    %1137 = vmatpush1.msra.mxu0 0.0
    %1138 = vmatprep.subr.mxu0 0.0
    %1139 = vmatpush1.msra.mxu0 0.0
    %1140 = vmatprep.subr.mxu0 0.0
    %1141 = vmatpush1.msra.mxu0 0.0
    %1142 = vmatprep.subr.mxu0 0.0
    %1143 = vmatpush1.msra.mxu0 0.0
    %1144 = vmatprep.subr.mxu0 0.0
    %1145 = vmatpush1.msra.mxu0 0.0
    %1146 = vmatprep.subr.mxu0 0.0
    %1147 = vmatpush1.msra.mxu0 0.0
    %1148 = vmatprep.subr.mxu0 0.0
    %1149 = vmatpush1.msra.mxu0 0.0
    %1150 = vmatprep.subr.mxu0 0.0
    %1151 = vmatpush1.msra.mxu0 0.0
    %1152 = vmatprep.subr.mxu0 0.0
    %1153 = vmatpush1.msra.mxu0 0.0
    %1154 = vmatprep.subr.mxu0 0.0
    %1155 = vmatpush1.msra.mxu0 0.0
    %1156 = vmatprep.subr.mxu0 0.0
    %1157 = vmatpush1.msra.mxu0 0.0
    %1158 = vmatprep.subr.mxu0 0.0
    %1159 = vmatpush1.msra.mxu0 0.0
    %1160 = vmatprep.subr.mxu0 0.0
    %1161 = vmatpush1.msra.mxu0 0.0
    %1162 = vmatprep.mubr.f32.mxu0 0.0
    %1163 = vmatmul.mubr.f32.gmra.mrb[0].mxu0 %v591
    %v1164 = vpop.f32.mrb[0].mxu0
    %v1165 = vadd.f32 0.0, %v1164
    %v1166 = vpop.f32.mrb[0].mxu0
    %v1167 = vadd.f32 0.0, %v1166
    %1168 = vdwg.mxu0
    %v1169 = vadd.f32 %v660, %v662
    %v1170 = vadd.f32 %v1169, %v731
    %v1171 = vadd.f32 %v1170, %v733
    %v1172 = vadd.f32 %v1171, %v802
    %v1173 = vadd.f32 %v1172, %v804
    %v1174 = vadd.f32 %v1173, %v873
    %v1175 = vadd.f32 %v1174, %v875
    %1176 = vadd.xlane.f32.xlu0 %v1175
    %v1177 = vpop.xlane.xlu0 %1176
    %v1178 = vmul.f32 %v1177, 0.00048828125
    %v1179 = vadd.f32 %v952, %v954
    %v1180 = vadd.f32 %v1179, %v1023
    %v1181 = vadd.f32 %v1180, %v1025
    %v1182 = vadd.f32 %v1181, %v1094
    %v1183 = vadd.f32 %v1182, %v1096
    %v1184 = vadd.f32 %v1183, %v1165
    %v1185 = vadd.f32 %v1184, %v1167
    %1186 = vadd.xlane.f32.xlu0 %v1185
    %v1187 = vpop.xlane.xlu0 %1186
    %v1188 = vmul.f32 %v1187, 0.00048828125
    %v1189 = vmul.f32 %v1178, %v1178
    %v1190 = vsub.f32 %v1188, %v1189
    %v1191 = vld [vmem:[%s3] sm:$0xff]
    %v1192 = vadd.f32 %v1190, 1e-05
    %v1193 = vrsqrt.pop %v1192
    %v1194 = vmul.f32 %v1191, %v1193
    %v1195 = vld [vmem:[%s4] sm:$0xff]
    %v1196 = vmul.f32 %v1178, %v1194
    %v1197 = vsub.f32 %v1195, %v1196
    %1199 = vset.pattern.permute.xlu0 0
    %1200 = vperm.xlu0 %1199, %v1194
    %v1201 = vpop.permute.xlu0 %1200
    %v1203 = vmul.f32 %v371, %v1201
    %v1204 = vmul.f32 %v373, %v1201
    %v1205 = vmul.f32 %v442, %v1201
    %v1206 = vmul.f32 %v444, %v1201
    %v1207 = vmul.f32 %v513, %v1201
    %v1208 = vmul.f32 %v515, %v1201
    %v1209 = vmul.f32 %v584, %v1201
    %v1210 = vmul.f32 %v586, %v1201
    %1212 = vset.pattern.permute.xlu0 0
    %1213 = vperm.xlu0 %1212, %v1197
    %v1214 = vpop.permute.xlu0 %1213
    %v1216 = vadd.f32 %v1203, %v1214
    %v1217 = vadd.f32 %v1204, %v1214
    %v1218 = vadd.f32 %v1205, %v1214
    %v1219 = vadd.f32 %v1206, %v1214
    %v1220 = vadd.f32 %v1207, %v1214
    %v1221 = vadd.f32 %v1208, %v1214
    %v1222 = vadd.f32 %v1209, %v1214
    %v1223 = vadd.f32 %v1210, %v1214
    %1233 = vrot.lane.b32.xlu0 %v1216, 127
    %v1234 = vpop.permute.xlu0 %1233
    %1235 = vrot.lane.b32.xlu0 %v1217, 127
    %v1236 = vpop.permute.xlu0 %1235
    %1237 = vrot.lane.b32.xlu0 %v1218, 127
    %v1238 = vpop.permute.xlu0 %1237
    %1239 = vrot.lane.b32.xlu0 %v1219, 127
    %v1240 = vpop.permute.xlu0 %1239
    %1241 = vrot.lane.b32.xlu0 %v1220, 127
    %v1242 = vpop.permute.xlu0 %1241
    %1243 = vrot.lane.b32.xlu0 %v1221, 127
    %v1244 = vpop.permute.xlu0 %1243
    %1245 = vrot.lane.b32.xlu0 %v1222, 127
    %v1246 = vpop.permute.xlu0 %1245
    %1247 = vrot.lane.b32.xlu0 %v1223, 127
    %v1248 = vpop.permute.xlu0 %1247
    %1249 = vrot.lane.b32.xlu0 0.0, 127
    %v1250 = vpop.permute.xlu0 %1249
    %vm1251 = vcmask 1039360
    %v1252 = vsel %vm1251, %v1234, %v1236
    %v1253 = vsel %vm1251, %v1236, %v1238
    %v1254 = vsel %vm1251, %v1238, %v1240
    %v1255 = vsel %vm1251, %v1240, %v1242
    %v1256 = vsel %vm1251, %v1242, %v1244
    %v1257 = vsel %vm1251, %v1244, %v1246
    %v1258 = vsel %vm1251, %v1246, %v1248
    %v1259 = vsel %vm1251, %v1248, %v1250
    %1268 = vrot.lane.b32.xlu0 %v1216, 126
    %v1269 = vpop.permute.xlu0 %1268
    %1270 = vrot.lane.b32.xlu0 %v1217, 126
    %v1271 = vpop.permute.xlu0 %1270
    %1272 = vrot.lane.b32.xlu0 %v1218, 126
    %v1273 = vpop.permute.xlu0 %1272
    %1274 = vrot.lane.b32.xlu0 %v1219, 126
    %v1275 = vpop.permute.xlu0 %1274
    %1276 = vrot.lane.b32.xlu0 %v1220, 126
    %v1277 = vpop.permute.xlu0 %1276
    %1278 = vrot.lane.b32.xlu0 %v1221, 126
    %v1279 = vpop.permute.xlu0 %1278
    %1280 = vrot.lane.b32.xlu0 %v1222, 126
    %v1281 = vpop.permute.xlu0 %1280
    %1282 = vrot.lane.b32.xlu0 %v1223, 126
    %v1283 = vpop.permute.xlu0 %1282
    %1284 = vrot.lane.b32.xlu0 0.0, 126
    %v1285 = vpop.permute.xlu0 %1284
    %vm1286 = vcmask 1031168
    %v1287 = vsel %vm1286, %v1269, %v1271
    %v1288 = vsel %vm1286, %v1271, %v1273
    %v1289 = vsel %vm1286, %v1273, %v1275
    %v1290 = vsel %vm1286, %v1275, %v1277
    %v1291 = vsel %vm1286, %v1277, %v1279
    %v1292 = vsel %vm1286, %v1279, %v1281
    %v1293 = vsel %vm1286, %v1281, %v1283
    %v1294 = vsel %vm1286, %v1283, %v1285
    %1303 = vrot.lane.b32.xlu0 %v1216, 96
    %v1304 = vpop.permute.xlu0 %1303
    %1305 = vrot.lane.b32.xlu0 %v1217, 96
    %v1306 = vpop.permute.xlu0 %1305
    %1307 = vrot.lane.b32.xlu0 %v1218, 96
    %v1308 = vpop.permute.xlu0 %1307
    %1309 = vrot.lane.b32.xlu0 %v1219, 96
    %v1310 = vpop.permute.xlu0 %1309
    %1311 = vrot.lane.b32.xlu0 %v1220, 96
    %v1312 = vpop.permute.xlu0 %1311
    %1313 = vrot.lane.b32.xlu0 %v1221, 96
    %v1314 = vpop.permute.xlu0 %1313
    %1315 = vrot.lane.b32.xlu0 %v1222, 96
    %v1316 = vpop.permute.xlu0 %1315
    %1317 = vrot.lane.b32.xlu0 %v1223, 96
    %v1318 = vpop.permute.xlu0 %1317
    %1319 = vrot.lane.b32.xlu0 0.0, 96
    %v1320 = vpop.permute.xlu0 %1319
    %vm1321 = vcmask 785408
    %v1322 = vsel %vm1321, %v1304, %v1306
    %v1323 = vsel %vm1321, %v1306, %v1308
    %v1324 = vsel %vm1321, %v1308, %v1310
    %v1325 = vsel %vm1321, %v1310, %v1312
    %v1326 = vsel %vm1321, %v1312, %v1314
    %v1327 = vsel %vm1321, %v1314, %v1316
    %v1328 = vsel %vm1321, %v1316, %v1318
    %v1329 = vsel %vm1321, %v1318, %v1320
    %1338 = vrot.lane.b32.xlu0 %v1216, 95
    %v1339 = vpop.permute.xlu0 %1338
    %1340 = vrot.lane.b32.xlu0 %v1217, 95
    %v1341 = vpop.permute.xlu0 %1340
    %1342 = vrot.lane.b32.xlu0 %v1218, 95
    %v1343 = vpop.permute.xlu0 %1342
    %1344 = vrot.lane.b32.xlu0 %v1219, 95
    %v1345 = vpop.permute.xlu0 %1344
    %1346 = vrot.lane.b32.xlu0 %v1220, 95
    %v1347 = vpop.permute.xlu0 %1346
    %1348 = vrot.lane.b32.xlu0 %v1221, 95
    %v1349 = vpop.permute.xlu0 %1348
    %1350 = vrot.lane.b32.xlu0 %v1222, 95
    %v1351 = vpop.permute.xlu0 %1350
    %1352 = vrot.lane.b32.xlu0 %v1223, 95
    %v1353 = vpop.permute.xlu0 %1352
    %1354 = vrot.lane.b32.xlu0 0.0, 95
    %v1355 = vpop.permute.xlu0 %1354
    %vm1356 = vcmask 777216
    %v1357 = vsel %vm1356, %v1339, %v1341
    %v1358 = vsel %vm1356, %v1341, %v1343
    %v1359 = vsel %vm1356, %v1343, %v1345
    %v1360 = vsel %vm1356, %v1345, %v1347
    %v1361 = vsel %vm1356, %v1347, %v1349
    %v1362 = vsel %vm1356, %v1349, %v1351
    %v1363 = vsel %vm1356, %v1351, %v1353
    %v1364 = vsel %vm1356, %v1353, %v1355
    %1373 = vrot.lane.b32.xlu0 %v1216, 94
    %v1374 = vpop.permute.xlu0 %1373
    %1375 = vrot.lane.b32.xlu0 %v1217, 94
    %v1376 = vpop.permute.xlu0 %1375
    %1377 = vrot.lane.b32.xlu0 %v1218, 94
    %v1378 = vpop.permute.xlu0 %1377
    %1379 = vrot.lane.b32.xlu0 %v1219, 94
    %v1380 = vpop.permute.xlu0 %1379
    %1381 = vrot.lane.b32.xlu0 %v1220, 94
    %v1382 = vpop.permute.xlu0 %1381
    %1383 = vrot.lane.b32.xlu0 %v1221, 94
    %v1384 = vpop.permute.xlu0 %1383
    %1385 = vrot.lane.b32.xlu0 %v1222, 94
    %v1386 = vpop.permute.xlu0 %1385
    %1387 = vrot.lane.b32.xlu0 %v1223, 94
    %v1388 = vpop.permute.xlu0 %1387
    %1389 = vrot.lane.b32.xlu0 0.0, 94
    %v1390 = vpop.permute.xlu0 %1389
    %vm1391 = vcmask 769024
    %v1392 = vsel %vm1391, %v1374, %v1376
    %v1393 = vsel %vm1391, %v1376, %v1378
    %v1394 = vsel %vm1391, %v1378, %v1380
    %v1395 = vsel %vm1391, %v1380, %v1382
    %v1396 = vsel %vm1391, %v1382, %v1384
    %v1397 = vsel %vm1391, %v1384, %v1386
    %v1398 = vsel %vm1391, %v1386, %v1388
    %v1399 = vsel %vm1391, %v1388, %v1390
    %1408 = vrot.lane.b32.xlu0 %v1216, 64
    %v1409 = vpop.permute.xlu0 %1408
    %1410 = vrot.lane.b32.xlu0 %v1217, 64
    %v1411 = vpop.permute.xlu0 %1410
    %1412 = vrot.lane.b32.xlu0 %v1218, 64
    %v1413 = vpop.permute.xlu0 %1412
    %1414 = vrot.lane.b32.xlu0 %v1219, 64
    %v1415 = vpop.permute.xlu0 %1414
    %1416 = vrot.lane.b32.xlu0 %v1220, 64
    %v1417 = vpop.permute.xlu0 %1416
    %1418 = vrot.lane.b32.xlu0 %v1221, 64
    %v1419 = vpop.permute.xlu0 %1418
    %1420 = vrot.lane.b32.xlu0 %v1222, 64
    %v1421 = vpop.permute.xlu0 %1420
    %1422 = vrot.lane.b32.xlu0 %v1223, 64
    %v1423 = vpop.permute.xlu0 %1422
    %1424 = vrot.lane.b32.xlu0 0.0, 64
    %v1425 = vpop.permute.xlu0 %1424
    %vm1426 = vcmask 523264
    %v1427 = vsel %vm1426, %v1409, %v1411
    %v1428 = vsel %vm1426, %v1411, %v1413
    %v1429 = vsel %vm1426, %v1413, %v1415
    %v1430 = vsel %vm1426, %v1415, %v1417
    %v1431 = vsel %vm1426, %v1417, %v1419
    %v1432 = vsel %vm1426, %v1419, %v1421
    %v1433 = vsel %vm1426, %v1421, %v1423
    %v1434 = vsel %vm1426, %v1423, %v1425
    %1443 = vrot.lane.b32.xlu0 %v1216, 63
    %v1444 = vpop.permute.xlu0 %1443
    %1445 = vrot.lane.b32.xlu0 %v1217, 63
    %v1446 = vpop.permute.xlu0 %1445
    %1447 = vrot.lane.b32.xlu0 %v1218, 63
    %v1448 = vpop.permute.xlu0 %1447
    %1449 = vrot.lane.b32.xlu0 %v1219, 63
    %v1450 = vpop.permute.xlu0 %1449
    %1451 = vrot.lane.b32.xlu0 %v1220, 63
    %v1452 = vpop.permute.xlu0 %1451
    %1453 = vrot.lane.b32.xlu0 %v1221, 63
    %v1454 = vpop.permute.xlu0 %1453
    %1455 = vrot.lane.b32.xlu0 %v1222, 63
    %v1456 = vpop.permute.xlu0 %1455
    %1457 = vrot.lane.b32.xlu0 %v1223, 63
    %v1458 = vpop.permute.xlu0 %1457
    %1459 = vrot.lane.b32.xlu0 0.0, 63
    %v1460 = vpop.permute.xlu0 %1459
    %vm1461 = vcmask 515072
    %v1462 = vsel %vm1461, %v1444, %v1446
    %v1463 = vsel %vm1461, %v1446, %v1448
    %v1464 = vsel %vm1461, %v1448, %v1450
    %v1465 = vsel %vm1461, %v1450, %v1452
    %v1466 = vsel %vm1461, %v1452, %v1454
    %v1467 = vsel %vm1461, %v1454, %v1456
    %v1468 = vsel %vm1461, %v1456, %v1458
    %v1469 = vsel %vm1461, %v1458, %v1460
    %1478 = vrot.lane.b32.xlu0 %v1216, 62
    %v1479 = vpop.permute.xlu0 %1478
    %1480 = vrot.lane.b32.xlu0 %v1217, 62
    %v1481 = vpop.permute.xlu0 %1480
    %1482 = vrot.lane.b32.xlu0 %v1218, 62
    %v1483 = vpop.permute.xlu0 %1482
    %1484 = vrot.lane.b32.xlu0 %v1219, 62
    %v1485 = vpop.permute.xlu0 %1484
    %1486 = vrot.lane.b32.xlu0 %v1220, 62
    %v1487 = vpop.permute.xlu0 %1486
    %1488 = vrot.lane.b32.xlu0 %v1221, 62
    %v1489 = vpop.permute.xlu0 %1488
    %1490 = vrot.lane.b32.xlu0 %v1222, 62
    %v1491 = vpop.permute.xlu0 %1490
    %1492 = vrot.lane.b32.xlu0 %v1223, 62
    %v1493 = vpop.permute.xlu0 %1492
    %1494 = vrot.lane.b32.xlu0 0.0, 62
    %v1495 = vpop.permute.xlu0 %1494
    %vm1496 = vcmask 506880
    %v1497 = vsel %vm1496, %v1479, %v1481
    %v1498 = vsel %vm1496, %v1481, %v1483
    %v1499 = vsel %vm1496, %v1483, %v1485
    %v1500 = vsel %vm1496, %v1485, %v1487
    %v1501 = vsel %vm1496, %v1487, %v1489
    %v1502 = vsel %vm1496, %v1489, %v1491
    %v1503 = vsel %vm1496, %v1491, %v1493
    %v1504 = vsel %vm1496, %v1493, %v1495
    %v1513 = vld [vmem:[%s5] sm:$0xff]
    %v1514 = vld [vmem:[%s5 + $0x8] sm:$0xff]
    %v1515 = vld [vmem:[%s6] sm:$0xff]
    %v1516 = vld [vmem:[%s6 + $0x8] sm:$0xff]
    %1518 = vset.pattern.permute.xlu0 0
    %1519 = vperm.xlu0 %1518, %v1515
    %v1520 = vpop.permute.xlu0 %1519
    %1523 = vset.pattern.permute.xlu0 0
    %1524 = vperm.xlu0 %1523, %v1516
    %v1525 = vpop.permute.xlu0 %1524
    %vm1527 = vcmask 588800
    %v1529 = vsel %vm1527, %v1513, 0
    %v1532 = vsel %vm1527, %v1514, 0
    %1534 = vmatprep.subr.mxu0 %v1217
    %1535 = vmatpush1.msra.mxu0 %v1216
    %1536 = vmatprep.subr.mxu0 %v1253
    %1537 = vmatpush1.msra.mxu0 %v1252
    %1538 = vmatprep.subr.mxu0 %v1288
    %1539 = vmatpush1.msra.mxu0 %v1287
    %1540 = vmatprep.subr.mxu0 %v1323
    %1541 = vmatpush1.msra.mxu0 %v1322
    %1542 = vmatprep.subr.mxu0 %v1358
    %1543 = vmatpush1.msra.mxu0 %v1357
    %1544 = vmatprep.subr.mxu0 %v1393
    %1545 = vmatpush1.msra.mxu0 %v1392
    %1546 = vmatprep.subr.mxu0 %v1428
    %1547 = vmatpush1.msra.mxu0 %v1427
    %1548 = vmatprep.subr.mxu0 %v1463
    %1549 = vmatpush1.msra.mxu0 %v1462
    %1550 = vmatprep.subr.mxu0 %v1498
    %1551 = vmatpush1.msra.mxu0 %v1497
    %1552 = vmatprep.subr.mxu0 0.0
    %1553 = vmatpush1.msra.mxu0 0.0
    %1554 = vmatprep.subr.mxu0 0.0
    %1555 = vmatpush1.msra.mxu0 0.0
    %1556 = vmatprep.subr.mxu0 0.0
    %1557 = vmatpush1.msra.mxu0 0.0
    %1558 = vmatprep.subr.mxu0 0.0
    %1559 = vmatpush1.msra.mxu0 0.0
    %1560 = vmatprep.subr.mxu0 0.0
    %1561 = vmatpush1.msra.mxu0 0.0
    %1562 = vmatprep.subr.mxu0 0.0
    %1563 = vmatpush1.msra.mxu0 0.0
    %1564 = vmatprep.subr.mxu0 0.0
    %1565 = vmatpush1.msra.mxu0 0.0
    %1566 = vmatprep.subr.mxu0 0.0
    %1567 = vmatpush1.msra.mxu0 0.0
    %1568 = vmatprep.subr.mxu0 0.0
    %1569 = vmatpush1.msra.mxu0 0.0
    %1570 = vmatprep.subr.mxu0 0.0
    %1571 = vmatpush1.msra.mxu0 0.0
    %1572 = vmatprep.subr.mxu0 0.0
    %1573 = vmatpush1.msra.mxu0 0.0
    %1574 = vmatprep.subr.mxu0 0.0
    %1575 = vmatpush1.msra.mxu0 0.0
    %1576 = vmatprep.subr.mxu0 0.0
    %1577 = vmatpush1.msra.mxu0 0.0
    %1578 = vmatprep.subr.mxu0 0.0
    %1579 = vmatpush1.msra.mxu0 0.0
    %1580 = vmatprep.subr.mxu0 0.0
    %1581 = vmatpush1.msra.mxu0 0.0
    %1582 = vmatprep.subr.mxu0 0.0
    %1583 = vmatpush1.msra.mxu0 0.0
    %1584 = vmatprep.subr.mxu0 0.0
    %1585 = vmatpush1.msra.mxu0 0.0
    %1586 = vmatprep.subr.mxu0 0.0
    %1587 = vmatpush1.msra.mxu0 0.0
    %1588 = vmatprep.subr.mxu0 0.0
    %1589 = vmatpush1.msra.mxu0 0.0
    %1590 = vmatprep.subr.mxu0 0.0
    %1591 = vmatpush1.msra.mxu0 0.0
    %1592 = vmatprep.subr.mxu0 0.0
    %1593 = vmatpush1.msra.mxu0 0.0
    %1594 = vmatprep.subr.mxu0 0.0
    %1595 = vmatpush1.msra.mxu0 0.0
    %1596 = vmatprep.subr.mxu0 0.0
    %1597 = vmatpush1.msra.mxu0 0.0
    %1598 = vmatprep.mubr.f32.mxu0 0.0
    %1599 = vmatmul.mubr.f32.gmra.mrb[0].mxu0 %v1529
    %v1600 = vpop.f32.mrb[0].mxu0
    %v1601 = vadd.f32 %v1520, %v1600
    %v1602 = vpop.f32.mrb[0].mxu0
    %v1603 = vadd.f32 %v1520, %v1602
    %1604 = vmatprep.mubr.f32.mxu0 0.0
    %1605 = vmatmul.mubr.f32.gmra.mrb[0].mxu0 %v1532
    %v1606 = vpop.f32.mrb[0].mxu0
    %v1607 = vadd.f32 %v1525, %v1606
    %v1608 = vpop.f32.mrb[0].mxu0
    %v1609 = vadd.f32 %v1525, %v1608
    %1610 = vdwg.mxu0
    %1611 = vmatprep.subr.mxu0 %v1219
    %1612 = vmatpush1.msra.mxu0 %v1218
    %1613 = vmatprep.subr.mxu0 %v1255
    %1614 = vmatpush1.msra.mxu0 %v1254
    %1615 = vmatprep.subr.mxu0 %v1290
    %1616 = vmatpush1.msra.mxu0 %v1289
    %1617 = vmatprep.subr.mxu0 %v1325
    %1618 = vmatpush1.msra.mxu0 %v1324
    %1619 = vmatprep.subr.mxu0 %v1360
    %1620 = vmatpush1.msra.mxu0 %v1359
    %1621 = vmatprep.subr.mxu0 %v1395
    %1622 = vmatpush1.msra.mxu0 %v1394
    %1623 = vmatprep.subr.mxu0 %v1430
    %1624 = vmatpush1.msra.mxu0 %v1429
    %1625 = vmatprep.subr.mxu0 %v1465
    %1626 = vmatpush1.msra.mxu0 %v1464
    %1627 = vmatprep.subr.mxu0 %v1500
    %1628 = vmatpush1.msra.mxu0 %v1499
    %1629 = vmatprep.subr.mxu0 0.0
    %1630 = vmatpush1.msra.mxu0 0.0
    %1631 = vmatprep.subr.mxu0 0.0
    %1632 = vmatpush1.msra.mxu0 0.0
    %1633 = vmatprep.subr.mxu0 0.0
    %1634 = vmatpush1.msra.mxu0 0.0
    %1635 = vmatprep.subr.mxu0 0.0
    %1636 = vmatpush1.msra.mxu0 0.0
    %1637 = vmatprep.subr.mxu0 0.0
    %1638 = vmatpush1.msra.mxu0 0.0
    %1639 = vmatprep.subr.mxu0 0.0
    %1640 = vmatpush1.msra.mxu0 0.0
    %1641 = vmatprep.subr.mxu0 0.0
    %1642 = vmatpush1.msra.mxu0 0.0
    %1643 = vmatprep.subr.mxu0 0.0
    %1644 = vmatpush1.msra.mxu0 0.0
    %1645 = vmatprep.subr.mxu0 0.0
    %1646 = vmatpush1.msra.mxu0 0.0
    %1647 = vmatprep.subr.mxu0 0.0
    %1648 = vmatpush1.msra.mxu0 0.0
    %1649 = vmatprep.subr.mxu0 0.0
    %1650 = vmatpush1.msra.mxu0 0.0
    %1651 = vmatprep.subr.mxu0 0.0
    %1652 = vmatpush1.msra.mxu0 0.0
    %1653 = vmatprep.subr.mxu0 0.0
    %1654 = vmatpush1.msra.mxu0 0.0
    %1655 = vmatprep.subr.mxu0 0.0
    %1656 = vmatpush1.msra.mxu0 0.0
    %1657 = vmatprep.subr.mxu0 0.0
    %1658 = vmatpush1.msra.mxu0 0.0
    %1659 = vmatprep.subr.mxu0 0.0
    %1660 = vmatpush1.msra.mxu0 0.0
    %1661 = vmatprep.subr.mxu0 0.0
    %1662 = vmatpush1.msra.mxu0 0.0
    %1663 = vmatprep.subr.mxu0 0.0
    %1664 = vmatpush1.msra.mxu0 0.0
    %1665 = vmatprep.subr.mxu0 0.0
    %1666 = vmatpush1.msra.mxu0 0.0
    %1667 = vmatprep.subr.mxu0 0.0
    %1668 = vmatpush1.msra.mxu0 0.0
    %1669 = vmatprep.subr.mxu0 0.0
    %1670 = vmatpush1.msra.mxu0 0.0
    %1671 = vmatprep.subr.mxu0 0.0
    %1672 = vmatpush1.msra.mxu0 0.0
    %1673 = vmatprep.subr.mxu0 0.0
    %1674 = vmatpush1.msra.mxu0 0.0
    %1675 = vmatprep.mubr.f32.mxu0 0.0
    %1676 = vmatmul.mubr.f32.gmra.mrb[0].mxu0 %v1529
    %v1677 = vpop.f32.mrb[0].mxu0
    %v1678 = vadd.f32 %v1520, %v1677
    %v1679 = vpop.f32.mrb[0].mxu0
    %v1680 = vadd.f32 %v1520, %v1679
    %1681 = vmatprep.mubr.f32.mxu0 0.0
    %1682 = vmatmul.mubr.f32.gmra.mrb[0].mxu0 %v1532
    %v1683 = vpop.f32.mrb[0].mxu0
    %v1684 = vadd.f32 %v1525, %v1683
    %v1685 = vpop.f32.mrb[0].mxu0
    %v1686 = vadd.f32 %v1525, %v1685
    %1687 = vdwg.mxu0
    %1688 = vmatprep.subr.mxu0 %v1221
    %1689 = vmatpush1.msra.mxu0 %v1220
    %1690 = vmatprep.subr.mxu0 %v1257
    %1691 = vmatpush1.msra.mxu0 %v1256
    %1692 = vmatprep.subr.mxu0 %v1292
    %1693 = vmatpush1.msra.mxu0 %v1291
    %1694 = vmatprep.subr.mxu0 %v1327
    %1695 = vmatpush1.msra.mxu0 %v1326
    %1696 = vmatprep.subr.mxu0 %v1362
    %1697 = vmatpush1.msra.mxu0 %v1361
    %1698 = vmatprep.subr.mxu0 %v1397
    %1699 = vmatpush1.msra.mxu0 %v1396
    %1700 = vmatprep.subr.mxu0 %v1432
    %1701 = vmatpush1.msra.mxu0 %v1431
    %1702 = vmatprep.subr.mxu0 %v1467
    %1703 = vmatpush1.msra.mxu0 %v1466
    %1704 = vmatprep.subr.mxu0 %v1502
    %1705 = vmatpush1.msra.mxu0 %v1501
    %1706 = vmatprep.subr.mxu0 0.0
    %1707 = vmatpush1.msra.mxu0 0.0
    %1708 = vmatprep.subr.mxu0 0.0
    %1709 = vmatpush1.msra.mxu0 0.0
    %1710 = vmatprep.subr.mxu0 0.0
    %1711 = vmatpush1.msra.mxu0 0.0
    %1712 = vmatprep.subr.mxu0 0.0
    %1713 = vmatpush1.msra.mxu0 0.0
    %1714 = vmatprep.subr.mxu0 0.0
    %1715 = vmatpush1.msra.mxu0 0.0
    %1716 = vmatprep.subr.mxu0 0.0
    %1717 = vmatpush1.msra.mxu0 0.0
    %1718 = vmatprep.subr.mxu0 0.0
    %1719 = vmatpush1.msra.mxu0 0.0
    %1720 = vmatprep.subr.mxu0 0.0
    %1721 = vmatpush1.msra.mxu0 0.0
    %1722 = vmatprep.subr.mxu0 0.0
    %1723 = vmatpush1.msra.mxu0 0.0
    %1724 = vmatprep.subr.mxu0 0.0
    %1725 = vmatpush1.msra.mxu0 0.0
    %1726 = vmatprep.subr.mxu0 0.0
    %1727 = vmatpush1.msra.mxu0 0.0
    %1728 = vmatprep.subr.mxu0 0.0
    %1729 = vmatpush1.msra.mxu0 0.0
    %1730 = vmatprep.subr.mxu0 0.0
    %1731 = vmatpush1.msra.mxu0 0.0
    %1732 = vmatprep.subr.mxu0 0.0
    %1733 = vmatpush1.msra.mxu0 0.0
    %1734 = vmatprep.subr.mxu0 0.0
    %1735 = vmatpush1.msra.mxu0 0.0
    %1736 = vmatprep.subr.mxu0 0.0
    %1737 = vmatpush1.msra.mxu0 0.0
    %1738 = vmatprep.subr.mxu0 0.0
    %1739 = vmatpush1.msra.mxu0 0.0
    %1740 = vmatprep.subr.mxu0 0.0
    %1741 = vmatpush1.msra.mxu0 0.0
    %1742 = vmatprep.subr.mxu0 0.0
    %1743 = vmatpush1.msra.mxu0 0.0
    %1744 = vmatprep.subr.mxu0 0.0
    %1745 = vmatpush1.msra.mxu0 0.0
    %1746 = vmatprep.subr.mxu0 0.0
    %1747 = vmatpush1.msra.mxu0 0.0
    %1748 = vmatprep.subr.mxu0 0.0
    %1749 = vmatpush1.msra.mxu0 0.0
    %1750 = vmatprep.subr.mxu0 0.0
    %1751 = vmatpush1.msra.mxu0 0.0
    %1752 = vmatprep.mubr.f32.mxu0 0.0
    %1753 = vmatmul.mubr.f32.gmra.mrb[0].mxu0 %v1529
    %v1754 = vpop.f32.mrb[0].mxu0
    %v1755 = vadd.f32 %v1520, %v1754
    %v1756 = vpop.f32.mrb[0].mxu0
    %v1757 = vadd.f32 %v1520, %v1756
    %1758 = vmatprep.mubr.f32.mxu0 0.0
    %1759 = vmatmul.mubr.f32.gmra.mrb[0].mxu0 %v1532
    %v1760 = vpop.f32.mrb[0].mxu0
    %v1761 = vadd.f32 %v1525, %v1760
    %v1762 = vpop.f32.mrb[0].mxu0
    %v1763 = vadd.f32 %v1525, %v1762
    %1764 = vdwg.mxu0
    %1765 = vmatprep.subr.mxu0 %v1223
    %1766 = vmatpush1.msra.mxu0 %v1222
    %1767 = vmatprep.subr.mxu0 %v1259
    %1768 = vmatpush1.msra.mxu0 %v1258
    %1769 = vmatprep.subr.mxu0 %v1294
    %1770 = vmatpush1.msra.mxu0 %v1293
    %1771 = vmatprep.subr.mxu0 %v1329
    %1772 = vmatpush1.msra.mxu0 %v1328
    %1773 = vmatprep.subr.mxu0 %v1364
    %1774 = vmatpush1.msra.mxu0 %v1363
    %1775 = vmatprep.subr.mxu0 %v1399
    %1776 = vmatpush1.msra.mxu0 %v1398
    %1777 = vmatprep.subr.mxu0 %v1434
    %1778 = vmatpush1.msra.mxu0 %v1433
    %1779 = vmatprep.subr.mxu0 %v1469
    %1780 = vmatpush1.msra.mxu0 %v1468
    %1781 = vmatprep.subr.mxu0 %v1504
    %1782 = vmatpush1.msra.mxu0 %v1503
    %1783 = vmatprep.subr.mxu0 0.0
    %1784 = vmatpush1.msra.mxu0 0.0
    %1785 = vmatprep.subr.mxu0 0.0
    %1786 = vmatpush1.msra.mxu0 0.0
    %1787 = vmatprep.subr.mxu0 0.0
    %1788 = vmatpush1.msra.mxu0 0.0
    %1789 = vmatprep.subr.mxu0 0.0
    %1790 = vmatpush1.msra.mxu0 0.0
    %1791 = vmatprep.subr.mxu0 0.0
    %1792 = vmatpush1.msra.mxu0 0.0
    %1793 = vmatprep.subr.mxu0 0.0
    %1794 = vmatpush1.msra.mxu0 0.0
    %1795 = vmatprep.subr.mxu0 0.0
    %1796 = vmatpush1.msra.mxu0 0.0
    %1797 = vmatprep.subr.mxu0 0.0
    %1798 = vmatpush1.msra.mxu0 0.0
    %1799 = vmatprep.subr.mxu0 0.0
    %1800 = vmatpush1.msra.mxu0 0.0
    %1801 = vmatprep.subr.mxu0 0.0
    %1802 = vmatpush1.msra.mxu0 0.0
    %1803 = vmatprep.subr.mxu0 0.0
    %1804 = vmatpush1.msra.mxu0 0.0
    %1805 = vmatprep.subr.mxu0 0.0
    %1806 = vmatpush1.msra.mxu0 0.0
    %1807 = vmatprep.subr.mxu0 0.0
    %1808 = vmatpush1.msra.mxu0 0.0
    %1809 = vmatprep.subr.mxu0 0.0
    %1810 = vmatpush1.msra.mxu0 0.0
    %1811 = vmatprep.subr.mxu0 0.0
    %1812 = vmatpush1.msra.mxu0 0.0
    %1813 = vmatprep.subr.mxu0 0.0
    %1814 = vmatpush1.msra.mxu0 0.0
    %1815 = vmatprep.subr.mxu0 0.0
    %1816 = vmatpush1.msra.mxu0 0.0
    %1817 = vmatprep.subr.mxu0 0.0
    %1818 = vmatpush1.msra.mxu0 0.0
    %1819 = vmatprep.subr.mxu0 0.0
    %1820 = vmatpush1.msra.mxu0 0.0
    %1821 = vmatprep.subr.mxu0 0.0
    %1822 = vmatpush1.msra.mxu0 0.0
    %1823 = vmatprep.subr.mxu0 0.0
    %1824 = vmatpush1.msra.mxu0 0.0
    %1825 = vmatprep.subr.mxu0 0.0
    %1826 = vmatpush1.msra.mxu0 0.0
    %1827 = vmatprep.subr.mxu0 0.0
    %1828 = vmatpush1.msra.mxu0 0.0
    %1829 = vmatprep.mubr.f32.mxu0 0.0
    %1830 = vmatmul.mubr.f32.gmra.mrb[0].mxu0 %v1529
    %v1831 = vpop.f32.mrb[0].mxu0
    %v1832 = vadd.f32 %v1520, %v1831
    %v1833 = vpop.f32.mrb[0].mxu0
    %v1834 = vadd.f32 %v1520, %v1833
    %1835 = vmatprep.mubr.f32.mxu0 0.0
    %1836 = vmatmul.mubr.f32.gmra.mrb[0].mxu0 %v1532
    %v1837 = vpop.f32.mrb[0].mxu0
    %v1838 = vadd.f32 %v1525, %v1837
    %v1839 = vpop.f32.mrb[0].mxu0
    %v1840 = vadd.f32 %v1525, %v1839
    %1841 = vdwg.mxu0
    %v1842 = vmul.f32 %v1601, 0.01
    %v1843 = vmul.f32 %v1603, 0.01
    %v1844 = vmul.f32 %v1678, 0.01
    %v1845 = vmul.f32 %v1680, 0.01
    %v1846 = vmul.f32 %v1755, 0.01
    %v1847 = vmul.f32 %v1757, 0.01
    %v1848 = vmul.f32 %v1832, 0.01
    %v1849 = vmul.f32 %v1834, 0.01
    %v1850 = vmul.f32 %v1607, 0.01
    %v1851 = vmul.f32 %v1609, 0.01
    %v1852 = vmul.f32 %v1684, 0.01
    %v1853 = vmul.f32 %v1686, 0.01
    %v1854 = vmul.f32 %v1761, 0.01
    %v1855 = vmul.f32 %v1763, 0.01
    %v1856 = vmul.f32 %v1838, 0.01
    %v1857 = vmul.f32 %v1840, 0.01
    %v1858 = vmax.f32 %v1601, %v1842
    %v1859 = vmax.f32 %v1603, %v1843
    %v1860 = vmax.f32 %v1678, %v1844
    %v1861 = vmax.f32 %v1680, %v1845
    %v1862 = vmax.f32 %v1755, %v1846
    %v1863 = vmax.f32 %v1757, %v1847
    %v1864 = vmax.f32 %v1832, %v1848
    %v1865 = vmax.f32 %v1834, %v1849
    %v1866 = vmax.f32 %v1607, %v1850
    %v1867 = vmax.f32 %v1609, %v1851
    %v1868 = vmax.f32 %v1684, %v1852
    %v1869 = vmax.f32 %v1686, %v1853
    %v1870 = vmax.f32 %v1761, %v1854
    %v1871 = vmax.f32 %v1763, %v1855
    %v1872 = vmax.f32 %v1838, %v1856
    %v1873 = vmax.f32 %v1840, %v1857
    %1890 = vrot.lane.b32.xlu0 %v1858, 127
    %v1891 = vpop.permute.xlu0 %1890
    %1892 = vrot.lane.b32.xlu0 %v1859, 127
    %v1893 = vpop.permute.xlu0 %1892
    %1894 = vrot.lane.b32.xlu0 %v1860, 127
    %v1895 = vpop.permute.xlu0 %1894
    %1896 = vrot.lane.b32.xlu0 %v1861, 127
    %v1897 = vpop.permute.xlu0 %1896
    %1898 = vrot.lane.b32.xlu0 %v1862, 127
    %v1899 = vpop.permute.xlu0 %1898
    %1900 = vrot.lane.b32.xlu0 %v1863, 127
    %v1901 = vpop.permute.xlu0 %1900
    %1902 = vrot.lane.b32.xlu0 %v1864, 127
    %v1903 = vpop.permute.xlu0 %1902
    %1904 = vrot.lane.b32.xlu0 %v1865, 127
    %v1905 = vpop.permute.xlu0 %1904
    %1906 = vrot.lane.b32.xlu0 %v1866, 127
    %v1907 = vpop.permute.xlu0 %1906
    %1908 = vrot.lane.b32.xlu0 %v1867, 127
    %v1909 = vpop.permute.xlu0 %1908
    %1910 = vrot.lane.b32.xlu0 %v1868, 127
    %v1911 = vpop.permute.xlu0 %1910
    %1912 = vrot.lane.b32.xlu0 %v1869, 127
    %v1913 = vpop.permute.xlu0 %1912
    %1914 = vrot.lane.b32.xlu0 %v1870, 127
    %v1915 = vpop.permute.xlu0 %1914
    %1916 = vrot.lane.b32.xlu0 %v1871, 127
    %v1917 = vpop.permute.xlu0 %1916
    %1918 = vrot.lane.b32.xlu0 %v1872, 127
    %v1919 = vpop.permute.xlu0 %1918
    %1920 = vrot.lane.b32.xlu0 %v1873, 127
    %v1921 = vpop.permute.xlu0 %1920
    %v1922 = vsel %vm1251, %v1891, %v1893
    %v1923 = vsel %vm1251, %v1893, %v1895
    %v1924 = vsel %vm1251, %v1895, %v1897
    %v1925 = vsel %vm1251, %v1897, %v1899
    %v1926 = vsel %vm1251, %v1899, %v1901
    %v1927 = vsel %vm1251, %v1901, %v1903
    %v1928 = vsel %vm1251, %v1903, %v1905
    %v1929 = vsel %vm1251, %v1905, %v1250
    %v1930 = vsel %vm1251, %v1907, %v1909
    %v1931 = vsel %vm1251, %v1909, %v1911
    %v1932 = vsel %vm1251, %v1911, %v1913
    %v1933 = vsel %vm1251, %v1913, %v1915
    %v1934 = vsel %vm1251, %v1915, %v1917
    %v1935 = vsel %vm1251, %v1917, %v1919
    %v1936 = vsel %vm1251, %v1919, %v1921
    %v1937 = vsel %vm1251, %v1921, %v1250
    %1954 = vrot.lane.b32.xlu0 %v1858, 126
    %v1955 = vpop.permute.xlu0 %1954
    %1956 = vrot.lane.b32.xlu0 %v1859, 126
    %v1957 = vpop.permute.xlu0 %1956
    %1958 = vrot.lane.b32.xlu0 %v1860, 126
    %v1959 = vpop.permute.xlu0 %1958
    %1960 = vrot.lane.b32.xlu0 %v1861, 126
    %v1961 = vpop.permute.xlu0 %1960
    %1962 = vrot.lane.b32.xlu0 %v1862, 126
    %v1963 = vpop.permute.xlu0 %1962
    %1964 = vrot.lane.b32.xlu0 %v1863, 126
    %v1965 = vpop.permute.xlu0 %1964
    %1966 = vrot.lane.b32.xlu0 %v1864, 126
    %v1967 = vpop.permute.xlu0 %1966
    %1968 = vrot.lane.b32.xlu0 %v1865, 126
    %v1969 = vpop.permute.xlu0 %1968
    %1970 = vrot.lane.b32.xlu0 %v1866, 126
    %v1971 = vpop.permute.xlu0 %1970
    %1972 = vrot.lane.b32.xlu0 %v1867, 126
    %v1973 = vpop.permute.xlu0 %1972
    %1974 = vrot.lane.b32.xlu0 %v1868, 126
    %v1975 = vpop.permute.xlu0 %1974
    %1976 = vrot.lane.b32.xlu0 %v1869, 126
    %v1977 = vpop.permute.xlu0 %1976
    %1978 = vrot.lane.b32.xlu0 %v1870, 126
    %v1979 = vpop.permute.xlu0 %1978
    %1980 = vrot.lane.b32.xlu0 %v1871, 126
    %v1981 = vpop.permute.xlu0 %1980
    %1982 = vrot.lane.b32.xlu0 %v1872, 126
    %v1983 = vpop.permute.xlu0 %1982
    %1984 = vrot.lane.b32.xlu0 %v1873, 126
    %v1985 = vpop.permute.xlu0 %1984
    %v1986 = vsel %vm1286, %v1955, %v1957
    %v1987 = vsel %vm1286, %v1957, %v1959
    %v1988 = vsel %vm1286, %v1959, %v1961
    %v1989 = vsel %vm1286, %v1961, %v1963
    %v1990 = vsel %vm1286, %v1963, %v1965
    %v1991 = vsel %vm1286, %v1965, %v1967
    %v1992 = vsel %vm1286, %v1967, %v1969
    %v1993 = vsel %vm1286, %v1969, %v1285
    %v1994 = vsel %vm1286, %v1971, %v1973
    %v1995 = vsel %vm1286, %v1973, %v1975
    %v1996 = vsel %vm1286, %v1975, %v1977
    %v1997 = vsel %vm1286, %v1977, %v1979
    %v1998 = vsel %vm1286, %v1979, %v1981
    %v1999 = vsel %vm1286, %v1981, %v1983
    %v2000 = vsel %vm1286, %v1983, %v1985
    %v2001 = vsel %vm1286, %v1985, %v1285
    %2018 = vrot.lane.b32.xlu0 %v1858, 96
    %v2019 = vpop.permute.xlu0 %2018
    %2020 = vrot.lane.b32.xlu0 %v1859, 96
    %v2021 = vpop.permute.xlu0 %2020
    %2022 = vrot.lane.b32.xlu0 %v1860, 96
    %v2023 = vpop.permute.xlu0 %2022
    %2024 = vrot.lane.b32.xlu0 %v1861, 96
    %v2025 = vpop.permute.xlu0 %2024
    %2026 = vrot.lane.b32.xlu0 %v1862, 96
    %v2027 = vpop.permute.xlu0 %2026
    %2028 = vrot.lane.b32.xlu0 %v1863, 96
    %v2029 = vpop.permute.xlu0 %2028
    %2030 = vrot.lane.b32.xlu0 %v1864, 96
    %v2031 = vpop.permute.xlu0 %2030
    %2032 = vrot.lane.b32.xlu0 %v1865, 96
    %v2033 = vpop.permute.xlu0 %2032
    %2034 = vrot.lane.b32.xlu0 %v1866, 96
    %v2035 = vpop.permute.xlu0 %2034
    %2036 = vrot.lane.b32.xlu0 %v1867, 96
    %v2037 = vpop.permute.xlu0 %2036
    %2038 = vrot.lane.b32.xlu0 %v1868, 96
    %v2039 = vpop.permute.xlu0 %2038
    %2040 = vrot.lane.b32.xlu0 %v1869, 96
    %v2041 = vpop.permute.xlu0 %2040
    %2042 = vrot.lane.b32.xlu0 %v1870, 96
    %v2043 = vpop.permute.xlu0 %2042
    %2044 = vrot.lane.b32.xlu0 %v1871, 96
    %v2045 = vpop.permute.xlu0 %2044
    %2046 = vrot.lane.b32.xlu0 %v1872, 96
    %v2047 = vpop.permute.xlu0 %2046
    %2048 = vrot.lane.b32.xlu0 %v1873, 96
    %v2049 = vpop.permute.xlu0 %2048
    %v2050 = vsel %vm1321, %v2019, %v2021
    %v2051 = vsel %vm1321, %v2021, %v2023
    %v2052 = vsel %vm1321, %v2023, %v2025
    %v2053 = vsel %vm1321, %v2025, %v2027
    %v2054 = vsel %vm1321, %v2027, %v2029
    %v2055 = vsel %vm1321, %v2029, %v2031
    %v2056 = vsel %vm1321, %v2031, %v2033
    %v2057 = vsel %vm1321, %v2033, %v1320
    %v2058 = vsel %vm1321, %v2035, %v2037
    %v2059 = vsel %vm1321, %v2037, %v2039
    %v2060 = vsel %vm1321, %v2039, %v2041
    %v2061 = vsel %vm1321, %v2041, %v2043
    %v2062 = vsel %vm1321, %v2043, %v2045
    %v2063 = vsel %vm1321, %v2045, %v2047
    %v2064 = vsel %vm1321, %v2047, %v2049
    %v2065 = vsel %vm1321, %v2049, %v1320
    %2082 = vrot.lane.b32.xlu0 %v1858, 95
    %v2083 = vpop.permute.xlu0 %2082
    %2084 = vrot.lane.b32.xlu0 %v1859, 95
    %v2085 = vpop.permute.xlu0 %2084
    %2086 = vrot.lane.b32.xlu0 %v1860, 95
    %v2087 = vpop.permute.xlu0 %2086
    %2088 = vrot.lane.b32.xlu0 %v1861, 95
    %v2089 = vpop.permute.xlu0 %2088
    %2090 = vrot.lane.b32.xlu0 %v1862, 95
    %v2091 = vpop.permute.xlu0 %2090
    %2092 = vrot.lane.b32.xlu0 %v1863, 95
    %v2093 = vpop.permute.xlu0 %2092
    %2094 = vrot.lane.b32.xlu0 %v1864, 95
    %v2095 = vpop.permute.xlu0 %2094
    %2096 = vrot.lane.b32.xlu0 %v1865, 95
    %v2097 = vpop.permute.xlu0 %2096
    %2098 = vrot.lane.b32.xlu0 %v1866, 95
    %v2099 = vpop.permute.xlu0 %2098
    %2100 = vrot.lane.b32.xlu0 %v1867, 95
    %v2101 = vpop.permute.xlu0 %2100
    %2102 = vrot.lane.b32.xlu0 %v1868, 95
    %v2103 = vpop.permute.xlu0 %2102
    %2104 = vrot.lane.b32.xlu0 %v1869, 95
    %v2105 = vpop.permute.xlu0 %2104
    %2106 = vrot.lane.b32.xlu0 %v1870, 95
    %v2107 = vpop.permute.xlu0 %2106
    %2108 = vrot.lane.b32.xlu0 %v1871, 95
    %v2109 = vpop.permute.xlu0 %2108
    %2110 = vrot.lane.b32.xlu0 %v1872, 95
    %v2111 = vpop.permute.xlu0 %2110
    %2112 = vrot.lane.b32.xlu0 %v1873, 95
    %v2113 = vpop.permute.xlu0 %2112
    %v2114 = vsel %vm1356, %v2083, %v2085
    %v2115 = vsel %vm1356, %v2085, %v2087
    %v2116 = vsel %vm1356, %v2087, %v2089
    %v2117 = vsel %vm1356, %v2089, %v2091
    %v2118 = vsel %vm1356, %v2091, %v2093
    %v2119 = vsel %vm1356, %v2093, %v2095
    %v2120 = vsel %vm1356, %v2095, %v2097
    %v2121 = vsel %vm1356, %v2097, %v1355
    %v2122 = vsel %vm1356, %v2099, %v2101
    %v2123 = vsel %vm1356, %v2101, %v2103
    %v2124 = vsel %vm1356, %v2103, %v2105
    %v2125 = vsel %vm1356, %v2105, %v2107
    %v2126 = vsel %vm1356, %v2107, %v2109
    %v2127 = vsel %vm1356, %v2109, %v2111
    %v2128 = vsel %vm1356, %v2111, %v2113
    %v2129 = vsel %vm1356, %v2113, %v1355
    %2146 = vrot.lane.b32.xlu0 %v1858, 94
    %v2147 = vpop.permute.xlu0 %2146
    %2148 = vrot.lane.b32.xlu0 %v1859, 94
    %v2149 = vpop.permute.xlu0 %2148
    %2150 = vrot.lane.b32.xlu0 %v1860, 94
    %v2151 = vpop.permute.xlu0 %2150
    %2152 = vrot.lane.b32.xlu0 %v1861, 94
    %v2153 = vpop.permute.xlu0 %2152
    %2154 = vrot.lane.b32.xlu0 %v1862, 94
    %v2155 = vpop.permute.xlu0 %2154
    %2156 = vrot.lane.b32.xlu0 %v1863, 94
    %v2157 = vpop.permute.xlu0 %2156
    %2158 = vrot.lane.b32.xlu0 %v1864, 94
    %v2159 = vpop.permute.xlu0 %2158
    %2160 = vrot.lane.b32.xlu0 %v1865, 94
    %v2161 = vpop.permute.xlu0 %2160
    %2162 = vrot.lane.b32.xlu0 %v1866, 94
    %v2163 = vpop.permute.xlu0 %2162
    %2164 = vrot.lane.b32.xlu0 %v1867, 94
    %v2165 = vpop.permute.xlu0 %2164
    %2166 = vrot.lane.b32.xlu0 %v1868, 94
    %v2167 = vpop.permute.xlu0 %2166
    %2168 = vrot.lane.b32.xlu0 %v1869, 94
    %v2169 = vpop.permute.xlu0 %2168
    %2170 = vrot.lane.b32.xlu0 %v1870, 94
    %v2171 = vpop.permute.xlu0 %2170
    %2172 = vrot.lane.b32.xlu0 %v1871, 94
    %v2173 = vpop.permute.xlu0 %2172
    %2174 = vrot.lane.b32.xlu0 %v1872, 94
    %v2175 = vpop.permute.xlu0 %2174
    %2176 = vrot.lane.b32.xlu0 %v1873, 94
    %v2177 = vpop.permute.xlu0 %2176
    %v2178 = vsel %vm1391, %v2147, %v2149
    %v2179 = vsel %vm1391, %v2149, %v2151
    %v2180 = vsel %vm1391, %v2151, %v2153
    %v2181 = vsel %vm1391, %v2153, %v2155
    %v2182 = vsel %vm1391, %v2155, %v2157
    %v2183 = vsel %vm1391, %v2157, %v2159
    %v2184 = vsel %vm1391, %v2159, %v2161
    %v2185 = vsel %vm1391, %v2161, %v1390
    %v2186 = vsel %vm1391, %v2163, %v2165
    %v2187 = vsel %vm1391, %v2165, %v2167
    %v2188 = vsel %vm1391, %v2167, %v2169
    %v2189 = vsel %vm1391, %v2169, %v2171
    %v2190 = vsel %vm1391, %v2171, %v2173
    %v2191 = vsel %vm1391, %v2173, %v2175
    %v2192 = vsel %vm1391, %v2175, %v2177
    %v2193 = vsel %vm1391, %v2177, %v1390
    %2210 = vrot.lane.b32.xlu0 %v1858, 64
    %v2211 = vpop.permute.xlu0 %2210
    %2212 = vrot.lane.b32.xlu0 %v1859, 64
    %v2213 = vpop.permute.xlu0 %2212
    %2214 = vrot.lane.b32.xlu0 %v1860, 64
    %v2215 = vpop.permute.xlu0 %2214
    %2216 = vrot.lane.b32.xlu0 %v1861, 64
    %v2217 = vpop.permute.xlu0 %2216
    %2218 = vrot.lane.b32.xlu0 %v1862, 64
    %v2219 = vpop.permute.xlu0 %2218
    %2220 = vrot.lane.b32.xlu0 %v1863, 64
    %v2221 = vpop.permute.xlu0 %2220
    %2222 = vrot.lane.b32.xlu0 %v1864, 64
    %v2223 = vpop.permute.xlu0 %2222
    %2224 = vrot.lane.b32.xlu0 %v1865, 64
    %v2225 = vpop.permute.xlu0 %2224
    %2226 = vrot.lane.b32.xlu0 %v1866, 64
    %v2227 = vpop.permute.xlu0 %2226
    %2228 = vrot.lane.b32.xlu0 %v1867, 64
    %v2229 = vpop.permute.xlu0 %2228
    %2230 = vrot.lane.b32.xlu0 %v1868, 64
    %v2231 = vpop.permute.xlu0 %2230
    %2232 = vrot.lane.b32.xlu0 %v1869, 64
    %v2233 = vpop.permute.xlu0 %2232
    %2234 = vrot.lane.b32.xlu0 %v1870, 64
    %v2235 = vpop.permute.xlu0 %2234
    %2236 = vrot.lane.b32.xlu0 %v1871, 64
    %v2237 = vpop.permute.xlu0 %2236
    %2238 = vrot.lane.b32.xlu0 %v1872, 64
    %v2239 = vpop.permute.xlu0 %2238
    %2240 = vrot.lane.b32.xlu0 %v1873, 64
    %v2241 = vpop.permute.xlu0 %2240
    %v2242 = vsel %vm1426, %v2211, %v2213
    %v2243 = vsel %vm1426, %v2213, %v2215
    %v2244 = vsel %vm1426, %v2215, %v2217
    %v2245 = vsel %vm1426, %v2217, %v2219
    %v2246 = vsel %vm1426, %v2219, %v2221
    %v2247 = vsel %vm1426, %v2221, %v2223
    %v2248 = vsel %vm1426, %v2223, %v2225
    %v2249 = vsel %vm1426, %v2225, %v1425
    %v2250 = vsel %vm1426, %v2227, %v2229
    %v2251 = vsel %vm1426, %v2229, %v2231
    %v2252 = vsel %vm1426, %v2231, %v2233
    %v2253 = vsel %vm1426, %v2233, %v2235
    %v2254 = vsel %vm1426, %v2235, %v2237
    %v2255 = vsel %vm1426, %v2237, %v2239
    %v2256 = vsel %vm1426, %v2239, %v2241
    %v2257 = vsel %vm1426, %v2241, %v1425
    %2274 = vrot.lane.b32.xlu0 %v1858, 63
    %v2275 = vpop.permute.xlu0 %2274
    %2276 = vrot.lane.b32.xlu0 %v1859, 63
    %v2277 = vpop.permute.xlu0 %2276
    %2278 = vrot.lane.b32.xlu0 %v1860, 63
    %v2279 = vpop.permute.xlu0 %2278
    %2280 = vrot.lane.b32.xlu0 %v1861, 63
    %v2281 = vpop.permute.xlu0 %2280
    %2282 = vrot.lane.b32.xlu0 %v1862, 63
    %v2283 = vpop.permute.xlu0 %2282
    %2284 = vrot.lane.b32.xlu0 %v1863, 63
    %v2285 = vpop.permute.xlu0 %2284
    %2286 = vrot.lane.b32.xlu0 %v1864, 63
    %v2287 = vpop.permute.xlu0 %2286
    %2288 = vrot.lane.b32.xlu0 %v1865, 63
    %v2289 = vpop.permute.xlu0 %2288
    %2290 = vrot.lane.b32.xlu0 %v1866, 63
    %v2291 = vpop.permute.xlu0 %2290
    %2292 = vrot.lane.b32.xlu0 %v1867, 63
    %v2293 = vpop.permute.xlu0 %2292
    %2294 = vrot.lane.b32.xlu0 %v1868, 63
    %v2295 = vpop.permute.xlu0 %2294
    %2296 = vrot.lane.b32.xlu0 %v1869, 63
    %v2297 = vpop.permute.xlu0 %2296
    %2298 = vrot.lane.b32.xlu0 %v1870, 63
    %v2299 = vpop.permute.xlu0 %2298
    %2300 = vrot.lane.b32.xlu0 %v1871, 63
    %v2301 = vpop.permute.xlu0 %2300
    %2302 = vrot.lane.b32.xlu0 %v1872, 63
    %v2303 = vpop.permute.xlu0 %2302
    %2304 = vrot.lane.b32.xlu0 %v1873, 63
    %v2305 = vpop.permute.xlu0 %2304
    %v2306 = vsel %vm1461, %v2275, %v2277
    %v2307 = vsel %vm1461, %v2277, %v2279
    %v2308 = vsel %vm1461, %v2279, %v2281
    %v2309 = vsel %vm1461, %v2281, %v2283
    %v2310 = vsel %vm1461, %v2283, %v2285
    %v2311 = vsel %vm1461, %v2285, %v2287
    %v2312 = vsel %vm1461, %v2287, %v2289
    %v2313 = vsel %vm1461, %v2289, %v1460
    %v2314 = vsel %vm1461, %v2291, %v2293
    %v2315 = vsel %vm1461, %v2293, %v2295
    %v2316 = vsel %vm1461, %v2295, %v2297
    %v2317 = vsel %vm1461, %v2297, %v2299
    %v2318 = vsel %vm1461, %v2299, %v2301
    %v2319 = vsel %vm1461, %v2301, %v2303
    %v2320 = vsel %vm1461, %v2303, %v2305
    %v2321 = vsel %vm1461, %v2305, %v1460
    %2338 = vrot.lane.b32.xlu0 %v1858, 62
    %v2339 = vpop.permute.xlu0 %2338
    %2340 = vrot.lane.b32.xlu0 %v1859, 62
    %v2341 = vpop.permute.xlu0 %2340
    %2342 = vrot.lane.b32.xlu0 %v1860, 62
    %v2343 = vpop.permute.xlu0 %2342
    %2344 = vrot.lane.b32.xlu0 %v1861, 62
    %v2345 = vpop.permute.xlu0 %2344
    %2346 = vrot.lane.b32.xlu0 %v1862, 62
    %v2347 = vpop.permute.xlu0 %2346
    %2348 = vrot.lane.b32.xlu0 %v1863, 62
    %v2349 = vpop.permute.xlu0 %2348
    %2350 = vrot.lane.b32.xlu0 %v1864, 62
    %v2351 = vpop.permute.xlu0 %2350
    %2352 = vrot.lane.b32.xlu0 %v1865, 62
    %v2353 = vpop.permute.xlu0 %2352
    %2354 = vrot.lane.b32.xlu0 %v1866, 62
    %v2355 = vpop.permute.xlu0 %2354
    %2356 = vrot.lane.b32.xlu0 %v1867, 62
    %v2357 = vpop.permute.xlu0 %2356
    %2358 = vrot.lane.b32.xlu0 %v1868, 62
    %v2359 = vpop.permute.xlu0 %2358
    %2360 = vrot.lane.b32.xlu0 %v1869, 62
    %v2361 = vpop.permute.xlu0 %2360
    %2362 = vrot.lane.b32.xlu0 %v1870, 62
    %v2363 = vpop.permute.xlu0 %2362
    %2364 = vrot.lane.b32.xlu0 %v1871, 62
    %v2365 = vpop.permute.xlu0 %2364
    %2366 = vrot.lane.b32.xlu0 %v1872, 62
    %v2367 = vpop.permute.xlu0 %2366
    %2368 = vrot.lane.b32.xlu0 %v1873, 62
    %v2369 = vpop.permute.xlu0 %2368
    %v2370 = vsel %vm1496, %v2339, %v2341
    %v2371 = vsel %vm1496, %v2341, %v2343
    %v2372 = vsel %vm1496, %v2343, %v2345
    %v2373 = vsel %vm1496, %v2345, %v2347
    %v2374 = vsel %vm1496, %v2347, %v2349
    %v2375 = vsel %vm1496, %v2349, %v2351
    %v2376 = vsel %vm1496, %v2351, %v2353
    %v2377 = vsel %vm1496, %v2353, %v1495
    %v2378 = vsel %vm1496, %v2355, %v2357
    %v2379 = vsel %vm1496, %v2357, %v2359
    %v2380 = vsel %vm1496, %v2359, %v2361
    %v2381 = vsel %vm1496, %v2361, %v2363
    %v2382 = vsel %vm1496, %v2363, %v2365
    %v2383 = vsel %vm1496, %v2365, %v2367
    %v2384 = vsel %vm1496, %v2367, %v2369
    %v2385 = vsel %vm1496, %v2369, %v1495
    %v2402 = vld [vmem:[%s7] sm:$0xff]
    %v2403 = vld [vmem:[%s7 + $0x8] sm:$0xff]
    %v2404 = vld [vmem:[%s7 + $0x10] sm:$0xff]
    %v2405 = vld [vmem:[%s7 + $0x18] sm:$0xff]
    %v2406 = vld [vmem:[%s8] sm:$0xff]
    %v2407 = vld [vmem:[%s8 + $0x8] sm:$0xff]
    %2409 = vset.pattern.permute.xlu0 0
    %2410 = vperm.xlu0 %2409, %v2406
    %v2411 = vpop.permute.xlu0 %2410
    %2414 = vset.pattern.permute.xlu0 0
    %2415 = vperm.xlu0 %2414, %v2407
    %v2416 = vpop.permute.xlu0 %2415
    %vm2418 = vcmask 130048
    %v2420 = vsel %vm2418, %v2403, 0
    %v2423 = vsel %vm2418, %v2405, 0
    %2425 = vmatprep.subr.mxu0 %v1859
    %2426 = vmatpush1.msra.mxu0 %v1858
    %2427 = vmatprep.subr.mxu0 %v1867
    %2428 = vmatpush1.msra.mxu0 %v1866
    %2429 = vmatprep.subr.mxu0 %v1923
    %2430 = vmatpush1.msra.mxu0 %v1922
    %2431 = vmatprep.subr.mxu0 %v1931
    %2432 = vmatpush1.msra.mxu0 %v1930
    %2433 = vmatprep.subr.mxu0 %v1987
    %2434 = vmatpush1.msra.mxu0 %v1986
    %2435 = vmatprep.subr.mxu0 %v1995
    %2436 = vmatpush1.msra.mxu0 %v1994
    %2437 = vmatprep.subr.mxu0 %v2051
    %2438 = vmatpush1.msra.mxu0 %v2050
    %2439 = vmatprep.subr.mxu0 %v2059
    %2440 = vmatpush1.msra.mxu0 %v2058
    %2441 = vmatprep.subr.mxu0 %v2115
    %2442 = vmatpush1.msra.mxu0 %v2114
    %2443 = vmatprep.subr.mxu0 %v2123
    %2444 = vmatpush1.msra.mxu0 %v2122
    %2445 = vmatprep.subr.mxu0 %v2179
    %2446 = vmatpush1.msra.mxu0 %v2178
    %2447 = vmatprep.subr.mxu0 %v2187
    %2448 = vmatpush1.msra.mxu0 %v2186
    %2449 = vmatprep.subr.mxu0 %v2243
    %2450 = vmatpush1.msra.mxu0 %v2242
    %2451 = vmatprep.subr.mxu0 %v2251
    %2452 = vmatpush1.msra.mxu0 %v2250
    %2453 = vmatprep.subr.mxu0 %v2307
    %2454 = vmatpush1.msra.mxu0 %v2306
    %2455 = vmatprep.subr.mxu0 %v2315
    %2456 = vmatpush1.msra.mxu0 %v2314
    %2457 = vmatprep.subr.mxu0 %v2371
    %2458 = vmatpush1.msra.mxu0 %v2370
    %2459 = vmatprep.subr.mxu0 %v2379
    %2460 = vmatpush1.msra.mxu0 %v2378
    %2461 = vmatprep.subr.mxu0 0.0
    %2462 = vmatpush1.msra.mxu0 0.0
    %2463 = vmatprep.subr.mxu0 0.0
    %2464 = vmatpush1.msra.mxu0 0.0
    %2465 = vmatprep.subr.mxu0 0.0
    %2466 = vmatpush1.msra.mxu0 0.0
    %2467 = vmatprep.subr.mxu0 0.0
    %2468 = vmatpush1.msra.mxu0 0.0
    %2469 = vmatprep.subr.mxu0 0.0
    %2470 = vmatpush1.msra.mxu0 0.0
    %2471 = vmatprep.subr.mxu0 0.0
    %2472 = vmatpush1.msra.mxu0 0.0
    %2473 = vmatprep.subr.mxu0 0.0
    %2474 = vmatpush1.msra.mxu0 0.0
    %2475 = vmatprep.subr.mxu0 0.0
    %2476 = vmatpush1.msra.mxu0 0.0
    %2477 = vmatprep.subr.mxu0 0.0
    %2478 = vmatpush1.msra.mxu0 0.0
    %2479 = vmatprep.subr.mxu0 0.0
    %2480 = vmatpush1.msra.mxu0 0.0
    %2481 = vmatprep.subr.mxu0 0.0
    %2482 = vmatpush1.msra.mxu0 0.0
    %2483 = vmatprep.subr.mxu0 0.0
    %2484 = vmatpush1.msra.mxu0 0.0
    %2485 = vmatprep.subr.mxu0 0.0
    %2486 = vmatpush1.msra.mxu0 0.0
    %2487 = vmatprep.subr.mxu0 0.0
    %2488 = vmatpush1.msra.mxu0 0.0
    %2489 = vmatprep.mubr.f32.mxu0 %v2420
    %2490 = vmatmul.mubr.f32.gmra.mrb[0].mxu0 %v2402
    %v2491 = vpop.f32.mrb[0].mxu0
    %v2492 = vadd.f32 %v2411, %v2491
    %v2493 = vpop.f32.mrb[0].mxu0
    %v2494 = vadd.f32 %v2411, %v2493
    %2495 = vmatprep.mubr.f32.mxu0 %v2423
    %2496 = vmatmul.mubr.f32.gmra.mrb[0].mxu0 %v2404
    %v2497 = vpop.f32.mrb[0].mxu0
    %v2498 = vadd.f32 %v2416, %v2497
    %v2499 = vpop.f32.mrb[0].mxu0
    %v2500 = vadd.f32 %v2416, %v2499
    %2501 = vdwg.mxu0
    %2502 = vmatprep.subr.mxu0 %v1861
    %2503 = vmatpush1.msra.mxu0 %v1860
    %2504 = vmatprep.subr.mxu0 %v1869
    %2505 = vmatpush1.msra.mxu0 %v1868
    %2506 = vmatprep.subr.mxu0 %v1925
    %2507 = vmatpush1.msra.mxu0 %v1924
    %2508 = vmatprep.subr.mxu0 %v1933
    %2509 = vmatpush1.msra.mxu0 %v1932
    %2510 = vmatprep.subr.mxu0 %v1989
    %2511 = vmatpush1.msra.mxu0 %v1988
    %2512 = vmatprep.subr.mxu0 %v1997
    %2513 = vmatpush1.msra.mxu0 %v1996
    %2514 = vmatprep.subr.mxu0 %v2053
    %2515 = vmatpush1.msra.mxu0 %v2052
    %2516 = vmatprep.subr.mxu0 %v2061
    %2517 = vmatpush1.msra.mxu0 %v2060
    %2518 = vmatprep.subr.mxu0 %v2117
    %2519 = vmatpush1.msra.mxu0 %v2116
    %2520 = vmatprep.subr.mxu0 %v2125
    %2521 = vmatpush1.msra.mxu0 %v2124
    %2522 = vmatprep.subr.mxu0 %v2181
    %2523 = vmatpush1.msra.mxu0 %v2180
    %2524 = vmatprep.subr.mxu0 %v2189
    %2525 = vmatpush1.msra.mxu0 %v2188
    %2526 = vmatprep.subr.mxu0 %v2245
    %2527 = vmatpush1.msra.mxu0 %v2244
    %2528 = vmatprep.subr.mxu0 %v2253
    %2529 = vmatpush1.msra.mxu0 %v2252
    %2530 = vmatprep.subr.mxu0 %v2309
    %2531 = vmatpush1.msra.mxu0 %v2308
    %2532 = vmatprep.subr.mxu0 %v2317
    %2533 = vmatpush1.msra.mxu0 %v2316
    %2534 = vmatprep.subr.mxu0 %v2373
    %2535 = vmatpush1.msra.mxu0 %v2372
    %2536 = vmatprep.subr.mxu0 %v2381
    %2537 = vmatpush1.msra.mxu0 %v2380
    %2538 = vmatprep.subr.mxu0 0.0
    %2539 = vmatpush1.msra.mxu0 0.0
    %2540 = vmatprep.subr.mxu0 0.0
    %2541 = vmatpush1.msra.mxu0 0.0
    %2542 = vmatprep.subr.mxu0 0.0
    %2543 = vmatpush1.msra.mxu0 0.0
    %2544 = vmatprep.subr.mxu0 0.0
    %2545 = vmatpush1.msra.mxu0 0.0
    %2546 = vmatprep.subr.mxu0 0.0
    %2547 = vmatpush1.msra.mxu0 0.0
    %2548 = vmatprep.subr.mxu0 0.0
    %2549 = vmatpush1.msra.mxu0 0.0
    %2550 = vmatprep.subr.mxu0 0.0
    %2551 = vmatpush1.msra.mxu0 0.0
    %2552 = vmatprep.subr.mxu0 0.0
    %2553 = vmatpush1.msra.mxu0 0.0
    %2554 = vmatprep.subr.mxu0 0.0
    %2555 = vmatpush1.msra.mxu0 0.0
    %2556 = vmatprep.subr.mxu0 0.0
    %2557 = vmatpush1.msra.mxu0 0.0
    %2558 = vmatprep.subr.mxu0 0.0
    %2559 = vmatpush1.msra.mxu0 0.0
    %2560 = vmatprep.subr.mxu0 0.0
    %2561 = vmatpush1.msra.mxu0 0.0
    %2562 = vmatprep.subr.mxu0 0.0
    %2563 = vmatpush1.msra.mxu0 0.0
    %2564 = vmatprep.subr.mxu0 0.0
    %2565 = vmatpush1.msra.mxu0 0.0
    %2566 = vmatprep.mubr.f32.mxu0 %v2420
    %2567 = vmatmul.mubr.f32.gmra.mrb[0].mxu0 %v2402
    %v2568 = vpop.f32.mrb[0].mxu0
    %v2569 = vadd.f32 %v2411, %v2568
    %v2570 = vpop.f32.mrb[0].mxu0
    %v2571 = vadd.f32 %v2411, %v2570
    %2572 = vmatprep.mubr.f32.mxu0 %v2423
    %2573 = vmatmul.mubr.f32.gmra.mrb[0].mxu0 %v2404
    %v2574 = vpop.f32.mrb[0].mxu0
    %v2575 = vadd.f32 %v2416, %v2574
    %v2576 = vpop.f32.mrb[0].mxu0
    %v2577 = vadd.f32 %v2416, %v2576
    %2578 = vdwg.mxu0
    %2579 = vmatprep.subr.mxu0 %v1863
    %2580 = vmatpush1.msra.mxu0 %v1862
    %2581 = vmatprep.subr.mxu0 %v1871
    %2582 = vmatpush1.msra.mxu0 %v1870
    %2583 = vmatprep.subr.mxu0 %v1927
    %2584 = vmatpush1.msra.mxu0 %v1926
    %2585 = vmatprep.subr.mxu0 %v1935
    %2586 = vmatpush1.msra.mxu0 %v1934
    %2587 = vmatprep.subr.mxu0 %v1991
    %2588 = vmatpush1.msra.mxu0 %v1990
    %2589 = vmatprep.subr.mxu0 %v1999
    %2590 = vmatpush1.msra.mxu0 %v1998
    %2591 = vmatprep.subr.mxu0 %v2055
    %2592 = vmatpush1.msra.mxu0 %v2054
    %2593 = vmatprep.subr.mxu0 %v2063
    %2594 = vmatpush1.msra.mxu0 %v2062
    %2595 = vmatprep.subr.mxu0 %v2119
    %2596 = vmatpush1.msra.mxu0 %v2118
    %2597 = vmatprep.subr.mxu0 %v2127
    %2598 = vmatpush1.msra.mxu0 %v2126
    %2599 = vmatprep.subr.mxu0 %v2183
    %2600 = vmatpush1.msra.mxu0 %v2182
    %2601 = vmatprep.subr.mxu0 %v2191
    %2602 = vmatpush1.msra.mxu0 %v2190
    %2603 = vmatprep.subr.mxu0 %v2247
    %2604 = vmatpush1.msra.mxu0 %v2246
    %2605 = vmatprep.subr.mxu0 %v2255
    %2606 = vmatpush1.msra.mxu0 %v2254
    %2607 = vmatprep.subr.mxu0 %v2311
    %2608 = vmatpush1.msra.mxu0 %v2310
    %2609 = vmatprep.subr.mxu0 %v2319
    %2610 = vmatpush1.msra.mxu0 %v2318
    %2611 = vmatprep.subr.mxu0 %v2375
    %2612 = vmatpush1.msra.mxu0 %v2374
    %2613 = vmatprep.subr.mxu0 %v2383
    %2614 = vmatpush1.msra.mxu0 %v2382
    %2615 = vmatprep.subr.mxu0 0.0
    %2616 = vmatpush1.msra.mxu0 0.0
    %2617 = vmatprep.subr.mxu0 0.0
    %2618 = vmatpush1.msra.mxu0 0.0
    %2619 = vmatprep.subr.mxu0 0.0
    %2620 = vmatpush1.msra.mxu0 0.0
    %2621 = vmatprep.subr.mxu0 0.0
    %2622 = vmatpush1.msra.mxu0 0.0
    %2623 = vmatprep.subr.mxu0 0.0
    %2624 = vmatpush1.msra.mxu0 0.0
    %2625 = vmatprep.subr.mxu0 0.0
    %2626 = vmatpush1.msra.mxu0 0.0
    %2627 = vmatprep.subr.mxu0 0.0
    %2628 = vmatpush1.msra.mxu0 0.0
    %2629 = vmatprep.subr.mxu0 0.0
    %2630 = vmatpush1.msra.mxu0 0.0
    %2631 = vmatprep.subr.mxu0 0.0
    %2632 = vmatpush1.msra.mxu0 0.0
    %2633 = vmatprep.subr.mxu0 0.0
    %2634 = vmatpush1.msra.mxu0 0.0
    %2635 = vmatprep.subr.mxu0 0.0
    %2636 = vmatpush1.msra.mxu0 0.0
    %2637 = vmatprep.subr.mxu0 0.0
    %2638 = vmatpush1.msra.mxu0 0.0
    %2639 = vmatprep.subr.mxu0 0.0
    %2640 = vmatpush1.msra.mxu0 0.0
    %2641 = vmatprep.subr.mxu0 0.0
    %2642 = vmatpush1.msra.mxu0 0.0
    %2643 = vmatprep.mubr.f32.mxu0 %v2420
    %2644 = vmatmul.mubr.f32.gmra.mrb[0].mxu0 %v2402
    %v2645 = vpop.f32.mrb[0].mxu0
    %v2646 = vadd.f32 %v2411, %v2645
    %v2647 = vpop.f32.mrb[0].mxu0
    %v2648 = vadd.f32 %v2411, %v2647
    %2649 = vmatprep.mubr.f32.mxu0 %v2423
    %2650 = vmatmul.mubr.f32.gmra.mrb[0].mxu0 %v2404
    %v2651 = vpop.f32.mrb[0].mxu0
    %v2652 = vadd.f32 %v2416, %v2651
    %v2653 = vpop.f32.mrb[0].mxu0
    %v2654 = vadd.f32 %v2416, %v2653
    %2655 = vdwg.mxu0
    %2656 = vmatprep.subr.mxu0 %v1865
    %2657 = vmatpush1.msra.mxu0 %v1864
    %2658 = vmatprep.subr.mxu0 %v1873
    %2659 = vmatpush1.msra.mxu0 %v1872
    %2660 = vmatprep.subr.mxu0 %v1929
    %2661 = vmatpush1.msra.mxu0 %v1928
    %2662 = vmatprep.subr.mxu0 %v1937
    %2663 = vmatpush1.msra.mxu0 %v1936
    %2664 = vmatprep.subr.mxu0 %v1993
    %2665 = vmatpush1.msra.mxu0 %v1992
    %2666 = vmatprep.subr.mxu0 %v2001
    %2667 = vmatpush1.msra.mxu0 %v2000
    %2668 = vmatprep.subr.mxu0 %v2057
    %2669 = vmatpush1.msra.mxu0 %v2056
    %2670 = vmatprep.subr.mxu0 %v2065
    %2671 = vmatpush1.msra.mxu0 %v2064
    %2672 = vmatprep.subr.mxu0 %v2121
    %2673 = vmatpush1.msra.mxu0 %v2120
    %2674 = vmatprep.subr.mxu0 %v2129
    %2675 = vmatpush1.msra.mxu0 %v2128
    %2676 = vmatprep.subr.mxu0 %v2185
    %2677 = vmatpush1.msra.mxu0 %v2184
    %2678 = vmatprep.subr.mxu0 %v2193
    %2679 = vmatpush1.msra.mxu0 %v2192
    %2680 = vmatprep.subr.mxu0 %v2249
    %2681 = vmatpush1.msra.mxu0 %v2248
    %2682 = vmatprep.subr.mxu0 %v2257
    %2683 = vmatpush1.msra.mxu0 %v2256
    %2684 = vmatprep.subr.mxu0 %v2313
    %2685 = vmatpush1.msra.mxu0 %v2312
    %2686 = vmatprep.subr.mxu0 %v2321
    %2687 = vmatpush1.msra.mxu0 %v2320
    %2688 = vmatprep.subr.mxu0 %v2377
    %2689 = vmatpush1.msra.mxu0 %v2376
    %2690 = vmatprep.subr.mxu0 %v2385
    %2691 = vmatpush1.msra.mxu0 %v2384
    %2692 = vmatprep.subr.mxu0 0.0
    %2693 = vmatpush1.msra.mxu0 0.0
    %2694 = vmatprep.subr.mxu0 0.0
    %2695 = vmatpush1.msra.mxu0 0.0
    %2696 = vmatprep.subr.mxu0 0.0
    %2697 = vmatpush1.msra.mxu0 0.0
    %2698 = vmatprep.subr.mxu0 0.0
    %2699 = vmatpush1.msra.mxu0 0.0
    %2700 = vmatprep.subr.mxu0 0.0
    %2701 = vmatpush1.msra.mxu0 0.0
    %2702 = vmatprep.subr.mxu0 0.0
    %2703 = vmatpush1.msra.mxu0 0.0
    %2704 = vmatprep.subr.mxu0 0.0
    %2705 = vmatpush1.msra.mxu0 0.0
    %2706 = vmatprep.subr.mxu0 0.0
    %2707 = vmatpush1.msra.mxu0 0.0
    %2708 = vmatprep.subr.mxu0 0.0
    %2709 = vmatpush1.msra.mxu0 0.0
    %2710 = vmatprep.subr.mxu0 0.0
    %2711 = vmatpush1.msra.mxu0 0.0
    %2712 = vmatprep.subr.mxu0 0.0
    %2713 = vmatpush1.msra.mxu0 0.0
    %2714 = vmatprep.subr.mxu0 0.0
    %2715 = vmatpush1.msra.mxu0 0.0
    %2716 = vmatprep.subr.mxu0 0.0
    %2717 = vmatpush1.msra.mxu0 0.0
    %2718 = vmatprep.subr.mxu0 0.0
    %2719 = vmatpush1.msra.mxu0 0.0
    %2720 = vmatprep.mubr.f32.mxu0 %v2420
    %2721 = vmatmul.mubr.f32.gmra.mrb[0].mxu0 %v2402
    %v2722 = vpop.f32.mrb[0].mxu0
    %v2723 = vadd.f32 %v2411, %v2722
    %v2724 = vpop.f32.mrb[0].mxu0
    %v2725 = vadd.f32 %v2411, %v2724
    %2726 = vmatprep.mubr.f32.mxu0 %v2423
    %2727 = vmatmul.mubr.f32.gmra.mrb[0].mxu0 %v2404
    %v2728 = vpop.f32.mrb[0].mxu0
    %v2729 = vadd.f32 %v2416, %v2728
    %v2730 = vpop.f32.mrb[0].mxu0
    %v2731 = vadd.f32 %v2416, %v2730
    %2732 = vdwg.mxu0
    %v2733 = vmul.f32 %v2492, 0.01
    %v2734 = vmul.f32 %v2494, 0.01
    %v2735 = vmul.f32 %v2569, 0.01
    %v2736 = vmul.f32 %v2571, 0.01
    %v2737 = vmul.f32 %v2646, 0.01
    %v2738 = vmul.f32 %v2648, 0.01
    %v2739 = vmul.f32 %v2723, 0.01
    %v2740 = vmul.f32 %v2725, 0.01
    %v2741 = vmul.f32 %v2498, 0.01
    %v2742 = vmul.f32 %v2500, 0.01
    %v2743 = vmul.f32 %v2575, 0.01
    %v2744 = vmul.f32 %v2577, 0.01
    %v2745 = vmul.f32 %v2652, 0.01
    %v2746 = vmul.f32 %v2654, 0.01
    %v2747 = vmul.f32 %v2729, 0.01
    %v2748 = vmul.f32 %v2731, 0.01
    %v2749 = vmax.f32 %v2492, %v2733
    %v2750 = vmax.f32 %v2494, %v2734
    %v2751 = vmax.f32 %v2569, %v2735
    %v2752 = vmax.f32 %v2571, %v2736
    %v2753 = vmax.f32 %v2646, %v2737
    %v2754 = vmax.f32 %v2648, %v2738
    %v2755 = vmax.f32 %v2723, %v2739
    %v2756 = vmax.f32 %v2725, %v2740
    %v2757 = vmax.f32 %v2498, %v2741
    %v2758 = vmax.f32 %v2500, %v2742
    %v2759 = vmax.f32 %v2575, %v2743
    %v2760 = vmax.f32 %v2577, %v2744
    %v2761 = vmax.f32 %v2652, %v2745
    %v2762 = vmax.f32 %v2654, %v2746
    %v2763 = vmax.f32 %v2729, %v2747
    %v2764 = vmax.f32 %v2731, %v2748
    %2765 = vst [vmem:[%s9] sm:$0xff] %v2749
    %2766 = vst [vmem:[%s9 + $0x8] sm:$0xff] %v2750
    %2767 = vst [vmem:[%s9 + $0x10] sm:$0xff] %v2751
    %2768 = vst [vmem:[%s9 + $0x18] sm:$0xff] %v2752
    %2769 = vst [vmem:[%s9 + $0x20] sm:$0xff] %v2753
    %2770 = vst [vmem:[%s9 + $0x28] sm:$0xff] %v2754
    %2771 = vst [vmem:[%s9 + $0x30] sm:$0xff] %v2755
    %2772 = vst [vmem:[%s9 + $0x38] sm:$0xff] %v2756
    %2773 = vst [vmem:[%s9 + $0x40] sm:$0xff] %v2757
    %2774 = vst [vmem:[%s9 + $0x48] sm:$0xff] %v2758
    %2775 = vst [vmem:[%s9 + $0x50] sm:$0xff] %v2759
    %2776 = vst [vmem:[%s9 + $0x58] sm:$0xff] %v2760
    %2777 = vst [vmem:[%s9 + $0x60] sm:$0xff] %v2761
    %2778 = vst [vmem:[%s9 + $0x68] sm:$0xff] %v2762
    %2779 = vst [vmem:[%s9 + $0x70] sm:$0xff] %v2763
    %2780 = vst [vmem:[%s9 + $0x78] sm:$0xff] %v2764
    // Predicated region
    $region42: #{decoder_forward.1} parent=1 // pred_check
      _
    $region43: #{decoder_forward.1} parent=1 // pred_check_branch
      %2782 = sbr.rel (0) target = $region45
    $region44: #{decoder_forward.1} parent=1 // pred_region
      _
    $region45: #{decoder_forward.1} parent=1 // pred_fallthru
      _
    // Predicated region
    $region46: #{decoder_forward.1} parent=1 // pred_check
      _
    $region47: #{decoder_forward.1} parent=1 // pred_check_branch
      %2784 = sbr.rel (0) target = $region49
    $region48: #{decoder_forward.1} parent=1 // pred_region
      _
    $region49: #{decoder_forward.1} parent=1 // pred_fallthru
      _
    %2785 = vsyncpa [#allocation3], 1

</llo_original>
